<compile_context>
chip_gen: v5e
topology: v5e:2x2
jax: 0.10.0
libtpu: 0.0.40
codegen_flags: <defaults>
</compile_context>

<pallas_src>
import functools

import jax
import jax.numpy as jnp
from jax.experimental import pallas as pl
from jax.experimental.pallas import tpu as pltpu

HIDDEN = 512


def _round_up(x, m):
    return ((x + m - 1) // m) * m


def dqn_kernel(x_ref, w1_ref, b1_ref, w2_ref, b2_ref, w3_ref, b3_ref,
               w4_ref, b4_ref, o_ref):
    # Whole MLP (~1.2 MiB of bf16 weights) is VMEM-resident; one batch tile per
    # grid step.  bf16 on the MXU, f32 accumulation, f32 bias/ReLU epilogue on
    # the VPU packed straight back to bf16 for the next layer's LHS.
    def hidden(h_bf16, w_ref, b_ref):
        acc = jnp.dot(h_bf16, w_ref[...], preferred_element_type=jnp.float32)
        return jnp.maximum(acc + b_ref[...], 0.0).astype(jnp.bfloat16)

    h = hidden(x_ref[...], w1_ref, b1_ref)        # relu(fc1)
    h = hidden(h, w2_ref, b2_ref)                 # relu(fc2)
    h = hidden(h, w3_ref, b3_ref)                 # relu(fc3)
    out = jnp.dot(h, w4_ref[...],
                  preferred_element_type=jnp.float32) + b4_ref[...]
    o_ref[...] = out.astype(o_ref.dtype)          # fc7 (no activation)


def init_dqn_params(key, state_size, action_size):
    """PyTorch-style Linear init U(-1/sqrt(in), 1/sqrt(in)), stored directly in
    kernel layout: weight (in, out) bf16, bias (1, out) f32.  The final layer
    is zero-padded to a lane-dense multiple of 128 output columns."""
    out_pad = max(128, _round_up(action_size, 128))

    def linear(k, fan_in, fan_out, pad_to=None):
        kw, kb = jax.random.split(k)
        bound = 1.0 / jnp.sqrt(jnp.float32(fan_in))
        w = jax.random.uniform(kw, (fan_in, fan_out), jnp.float32, -bound, bound)
        b = jax.random.uniform(kb, (fan_out,), jnp.float32, -bound, bound)
        if pad_to is not None and pad_to > fan_out:
            w = jnp.pad(w, ((0, 0), (0, pad_to - fan_out)))
            b = jnp.pad(b, (0, pad_to - fan_out))
        return w.astype(jnp.bfloat16), b.reshape(1, -1).astype(jnp.float32)

    k1, k2, k3, k4 = jax.random.split(key, 4)
    return (
        linear(k1, state_size, HIDDEN),                 # fc1
        linear(k2, HIDDEN, HIDDEN),                     # fc2
        linear(k3, HIDDEN, HIDDEN),                     # fc3
        linear(k4, HIDDEN, action_size, pad_to=out_pad) # fc7 (final layer)
    )


def _choose_tile(batch):
    """Batch tile: multiple of 16 (bf16 LHS vreg = [16,128]), capped at 256
    (fills the v6e/v7x 256-row MXU), and chosen so batches >= 32 rows keep at
    least 2 grid steps (so v7x's two TensorCores both get work)."""
    b16 = _round_up(batch, 16)
    if b16 <= 16:
        return b16
    return min(256, _round_up((b16 + 1) // 2, 16))


@functools.partial(jax.jit, static_argnames=("action_size",))
def dqn_forward(x, params, action_size):
    (w1, b1), (w2, b2), (w3, b3), (w4, b4) = params
    B, S = x.shape
    out_pad = w4.shape[1]

    tile_b = _choose_tile(B)
    B_pad = _round_up(B, tile_b)

    x = x.astype(jnp.bfloat16)                     # halve input DMA
    if B_pad != B:
        x = jnp.pad(x, ((0, B_pad - B), (0, 0)))

    def wspec(shape):
        # Constant index_map -> weights/biases stay VMEM-resident across the
        # batch grid (re-DMA'd only once).
        return pl.BlockSpec(shape, lambda i: (0, 0))

    flops = 2 * B_pad * (S * HIDDEN + 2 * HIDDEN * HIDDEN + HIDDEN * out_pad)
    bytes_accessed = (
        int(x.size) * 2
        + sum(int(w.size) * 2 + int(b.size) * 4
              for w, b in ((w1, b1), (w2, b2), (w3, b3), (w4, b4)))
        + B_pad * out_pad * 4
    )

    out = pl.pallas_call(
        dqn_kernel,
        out_shape=jax.ShapeDtypeStruct((B_pad, out_pad), jnp.float32),
        grid_spec=pltpu.PrefetchScalarGridSpec(
            num_scalar_prefetch=0,
            grid=(B_pad // tile_b,),
            in_specs=[
                pl.BlockSpec((tile_b, S), lambda i: (i, 0)),    # x tile (bf16)
                wspec((S, HIDDEN)),       wspec((1, HIDDEN)),   # fc1
                wspec((HIDDEN, HIDDEN)),  wspec((1, HIDDEN)),   # fc2
                wspec((HIDDEN, HIDDEN)),  wspec((1, HIDDEN)),   # fc3
                wspec((HIDDEN, out_pad)), wspec((1, out_pad)),  # fc7 (padded)
            ],
            out_specs=pl.BlockSpec((tile_b, out_pad), lambda i: (i, 0)),
        ),
        compiler_params=pltpu.CompilerParams(
            dimension_semantics=("parallel",)),
        cost_estimate=pl.CostEstimate(
            flops=flops, transcendentals=0, bytes_accessed=bytes_accessed),
    )(x, w1, b1, w2, b2, w3, b3, w4, b4)

    # Strip batch / lane padding outside the kernel (cheap XLA slice).
    return out[:B, :action_size]


def dqn_reference(x, params, action_size):
    """Pure-JAX reference with numerics matched to the kernel
    (bf16 weights/activations, f32 accumulation + epilogue)."""
    (w1, b1), (w2, b2), (w3, b3), (w4, b4) = params
    h = x.astype(jnp.bfloat16)
    for w, b in ((w1, b1), (w2, b2), (w3, b3)):
        acc = jnp.dot(h, w, preferred_element_type=jnp.float32)
        h = jnp.maximum(acc + b, 0.0).astype(jnp.bfloat16)
    y = jnp.dot(h, w4, preferred_element_type=jnp.float32) + b4
    return y[:, :action_size]


if __name__ == "__main__":
    state_size = 16
    action_size = 4

    key = jax.random.PRNGKey(0)
    k_p, k_x1, k_x2 = jax.random.split(key, 3)

    params = init_dqn_params(k_p, state_size, action_size)

    # Tiny action-selection batch: single grid step, batch padded to 16.
    x_small = jax.random.normal(k_x1, (8, state_size), jnp.float32)
    out_small = jax.block_until_ready(dqn_forward(x_small, params, action_size))
    ref_small = dqn_reference(x_small, params, action_size)
    assert out_small.shape == (8, action_size)
    assert jnp.allclose(out_small, ref_small, atol=2e-2, rtol=2e-2), \
        float(jnp.max(jnp.abs(out_small - ref_small)))

    # Training-style replay batch: exercises the multi-step batch-parallel grid
    # and the batch-padding path.
    x_big = jax.random.normal(k_x2, (260, state_size), jnp.float32)
    out_big = jax.block_until_ready(dqn_forward(x_big, params, action_size))
    ref_big = dqn_reference(x_big, params, action_size)
    assert out_big.shape == (260, action_size)
    assert jnp.allclose(out_big, ref_big, atol=2e-2, rtol=2e-2), \
        float(jnp.max(jnp.abs(out_big - ref_big)))

    # TODO(synk): original torch forward() references self.fc4 which is never
    # defined (module defines fc7); we implement the intended final linear.
    print("KERNEL_OK")
</pallas_src>

<mosaic_0001>
module attributes {stable_mosaic.version = 11 : i64} {
  func.func @dqn_kernel(%arg0: i32, %arg1: memref<16x16xbf16, #tpu.memory_space<vmem>>, %arg2: memref<16x512xbf16, #tpu.memory_space<vmem>>, %arg3: memref<1x512xf32, #tpu.memory_space<vmem>>, %arg4: memref<512x512xbf16, #tpu.memory_space<vmem>>, %arg5: memref<1x512xf32, #tpu.memory_space<vmem>>, %arg6: memref<512x512xbf16, #tpu.memory_space<vmem>>, %arg7: memref<1x512xf32, #tpu.memory_space<vmem>>, %arg8: memref<512x128xbf16, #tpu.memory_space<vmem>>, %arg9: memref<1x128xf32, #tpu.memory_space<vmem>>, %arg10: memref<16x128xf32, #tpu.memory_space<vmem>>) attributes {dimension_semantics = [#tpu.dimension_semantics<parallel>], iteration_bounds = array<i64: 1>, scalar_prefetch = 0 : i64, scratch_operands = 0 : i64, tpu.core_type = #tpu.core_type<tc>, window_params = [{transform_indices = @transform_0, window_bounds = array<i64: 16, 16>}, {pipeline_mode = #tpu.pipeline_mode<synchronous>, transform_indices = @transform_1, window_bounds = array<i64: 16, 512>}, {pipeline_mode = #tpu.pipeline_mode<synchronous>, transform_indices = @transform_2, window_bounds = array<i64: 1, 512>}, {pipeline_mode = #tpu.pipeline_mode<synchronous>, transform_indices = @transform_3, window_bounds = array<i64: 512, 512>}, {pipeline_mode = #tpu.pipeline_mode<synchronous>, transform_indices = @transform_4, window_bounds = array<i64: 1, 512>}, {pipeline_mode = #tpu.pipeline_mode<synchronous>, transform_indices = @transform_5, window_bounds = array<i64: 512, 512>}, {pipeline_mode = #tpu.pipeline_mode<synchronous>, transform_indices = @transform_6, window_bounds = array<i64: 1, 512>}, {pipeline_mode = #tpu.pipeline_mode<synchronous>, transform_indices = @transform_7, window_bounds = array<i64: 512, 128>}, {pipeline_mode = #tpu.pipeline_mode<synchronous>, transform_indices = @transform_8, window_bounds = array<i64: 1, 128>}, {transform_indices = @transform_9, window_bounds = array<i64: 16, 128>}]} {
    %c0 = arith.constant 0 : index
    %c0_0 = arith.constant 0 : index
    %0 = vector.load %arg1[%c0, %c0_0] : memref<16x16xbf16, #tpu.memory_space<vmem>>, vector<16x16xbf16>
    %c0_1 = arith.constant 0 : index
    %c0_2 = arith.constant 0 : index
    %1 = vector.load %arg2[%c0_1, %c0_2] : memref<16x512xbf16, #tpu.memory_space<vmem>>, vector<16x512xbf16>
    %cst = arith.constant dense<0.000000e+00> : vector<16x512xf32>
    %2 = tpu.matmul %0, %1, %cst {dimension_numbers = #tpu.dot_dimension_numbers<[1], [0], [0], [1], [0, 0, 1, 1], [], []>} : vector<16x16xbf16>, vector<16x512xbf16>, vector<16x512xf32> -> vector<16x512xf32>
    %c0_3 = arith.constant 0 : index
    %c0_4 = arith.constant 0 : index
    %3 = vector.load %arg3[%c0_3, %c0_4] : memref<1x512xf32, #tpu.memory_space<vmem>>, vector<1x512xf32>
    %4 = vector.broadcast %3 : vector<1x512xf32> to vector<16x512xf32>
    %5 = arith.addf %2, %4 : vector<16x512xf32>
    %cst_5 = arith.constant 0.000000e+00 : f32
    %6 = vector.broadcast %cst_5 : f32 to vector<16x512xf32>
    %7 = arith.maximumf %5, %6 : vector<16x512xf32>
    %8 = arith.truncf %7 : vector<16x512xf32> to vector<16x512xbf16>
    %c0_6 = arith.constant 0 : index
    %c0_7 = arith.constant 0 : index
    %9 = vector.load %arg4[%c0_6, %c0_7] : memref<512x512xbf16, #tpu.memory_space<vmem>>, vector<512x512xbf16>
    %cst_8 = arith.constant dense<0.000000e+00> : vector<16x512xf32>
    %10 = tpu.matmul %8, %9, %cst_8 {dimension_numbers = #tpu.dot_dimension_numbers<[1], [0], [0], [1], [0, 0, 1, 1], [], []>} : vector<16x512xbf16>, vector<512x512xbf16>, vector<16x512xf32> -> vector<16x512xf32>
    %c0_9 = arith.constant 0 : index
    %c0_10 = arith.constant 0 : index
    %11 = vector.load %arg5[%c0_9, %c0_10] : memref<1x512xf32, #tpu.memory_space<vmem>>, vector<1x512xf32>
    %12 = vector.broadcast %11 : vector<1x512xf32> to vector<16x512xf32>
    %13 = arith.addf %10, %12 : vector<16x512xf32>
    %cst_11 = arith.constant 0.000000e+00 : f32
    %14 = vector.broadcast %cst_11 : f32 to vector<16x512xf32>
    %15 = arith.maximumf %13, %14 : vector<16x512xf32>
    %16 = arith.truncf %15 : vector<16x512xf32> to vector<16x512xbf16>
    %c0_12 = arith.constant 0 : index
    %c0_13 = arith.constant 0 : index
    %17 = vector.load %arg6[%c0_12, %c0_13] : memref<512x512xbf16, #tpu.memory_space<vmem>>, vector<512x512xbf16>
    %cst_14 = arith.constant dense<0.000000e+00> : vector<16x512xf32>
    %18 = tpu.matmul %16, %17, %cst_14 {dimension_numbers = #tpu.dot_dimension_numbers<[1], [0], [0], [1], [0, 0, 1, 1], [], []>} : vector<16x512xbf16>, vector<512x512xbf16>, vector<16x512xf32> -> vector<16x512xf32>
    %c0_15 = arith.constant 0 : index
    %c0_16 = arith.constant 0 : index
    %19 = vector.load %arg7[%c0_15, %c0_16] : memref<1x512xf32, #tpu.memory_space<vmem>>, vector<1x512xf32>
    %20 = vector.broadcast %19 : vector<1x512xf32> to vector<16x512xf32>
    %21 = arith.addf %18, %20 : vector<16x512xf32>
    %cst_17 = arith.constant 0.000000e+00 : f32
    %22 = vector.broadcast %cst_17 : f32 to vector<16x512xf32>
    %23 = arith.maximumf %21, %22 : vector<16x512xf32>
    %24 = arith.truncf %23 : vector<16x512xf32> to vector<16x512xbf16>
    %c0_18 = arith.constant 0 : index
    %c0_19 = arith.constant 0 : index
    %25 = vector.load %arg8[%c0_18, %c0_19] : memref<512x128xbf16, #tpu.memory_space<vmem>>, vector<512x128xbf16>
    %cst_20 = arith.constant dense<0.000000e+00> : vector<16x128xf32>
    %26 = tpu.matmul %24, %25, %cst_20 {dimension_numbers = #tpu.dot_dimension_numbers<[1], [0], [0], [1], [0, 0, 1, 1], [], []>} : vector<16x512xbf16>, vector<512x128xbf16>, vector<16x128xf32> -> vector<16x128xf32>
    %c0_21 = arith.constant 0 : index
    %c0_22 = arith.constant 0 : index
    %27 = vector.load %arg9[%c0_21, %c0_22] : memref<1x128xf32, #tpu.memory_space<vmem>>, vector<1x128xf32>
    %28 = vector.broadcast %27 : vector<1x128xf32> to vector<16x128xf32>
    %29 = arith.addf %26, %28 : vector<16x128xf32>
    %c0_23 = arith.constant 0 : index
    %c0_24 = arith.constant 0 : index
    %30 = vector.load %arg10[%c0_23, %c0_24] : memref<16x128xf32, #tpu.memory_space<vmem>>, vector<16x128xf32>
    tpu.vector_store %arg10[%c0_23, %c0_24], %29 {strides = array<i32>} : memref<16x128xf32, #tpu.memory_space<vmem>>, vector<16x128xf32>,
    return
  }
  func.func @transform_0(%arg0: i32) -> (i32, i32) {
    %c0_i32 = arith.constant 0 : i32
    %c0_i32_0 = arith.constant 0 : i32
    return %arg0, %c0_i32 : i32, i32
  }
  func.func @transform_1(%arg0: i32) -> (i32, i32) {
    %c0_i32 = arith.constant 0 : i32
    %c0_i32_0 = arith.constant 0 : i32
    %c0_i32_1 = arith.constant 0 : i32
    return %c0_i32, %c0_i32_0 : i32, i32
  }
  func.func @transform_2(%arg0: i32) -> (i32, i32) {
    %c0_i32 = arith.constant 0 : i32
    %c0_i32_0 = arith.constant 0 : i32
    %c0_i32_1 = arith.constant 0 : i32
    return %c0_i32, %c0_i32_0 : i32, i32
  }
  func.func @transform_3(%arg0: i32) -> (i32, i32) {
    %c0_i32 = arith.constant 0 : i32
    %c0_i32_0 = arith.constant 0 : i32
    %c0_i32_1 = arith.constant 0 : i32
    return %c0_i32, %c0_i32_0 : i32, i32
  }
  func.func @transform_4(%arg0: i32) -> (i32, i32) {
    %c0_i32 = arith.constant 0 : i32
    %c0_i32_0 = arith.constant 0 : i32
    %c0_i32_1 = arith.constant 0 : i32
    return %c0_i32, %c0_i32_0 : i32, i32
  }
  func.func @transform_5(%arg0: i32) -> (i32, i32) {
    %c0_i32 = arith.constant 0 : i32
    %c0_i32_0 = arith.constant 0 : i32
    %c0_i32_1 = arith.constant 0 : i32
    return %c0_i32, %c0_i32_0 : i32, i32
  }
  func.func @transform_6(%arg0: i32) -> (i32, i32) {
    %c0_i32 = arith.constant 0 : i32
    %c0_i32_0 = arith.constant 0 : i32
    %c0_i32_1 = arith.constant 0 : i32
    return %c0_i32, %c0_i32_0 : i32, i32
  }
  func.func @transform_7(%arg0: i32) -> (i32, i32) {
    %c0_i32 = arith.constant 0 : i32
    %c0_i32_0 = arith.constant 0 : i32
    %c0_i32_1 = arith.constant 0 : i32
    return %c0_i32, %c0_i32_0 : i32, i32
  }
  func.func @transform_8(%arg0: i32) -> (i32, i32) {
    %c0_i32 = arith.constant 0 : i32
    %c0_i32_0 = arith.constant 0 : i32
    %c0_i32_1 = arith.constant 0 : i32
    return %c0_i32, %c0_i32_0 : i32, i32
  }
  func.func @transform_9(%arg0: i32) -> (i32, i32) {
    %c0_i32 = arith.constant 0 : i32
    %c0_i32_0 = arith.constant 0 : i32
    return %arg0, %c0_i32 : i32, i32
  }
}

</mosaic_0001>

<llo_original>
// kernel: dqn_forward.1
$region0: #{dqn_forward.1}
  #allocation0 [shape = 'u32[]', space=smem, size = 0x4, offset = 0x4, fixed_abs, tag = 'smem constant byte address 0x4 - core index']
  #allocation1 [shape = 'u32[72,128]{1,0:T(1,128)}', space=vmem, size = 0x9000, scoped, tag = 'internal scratch']
  %s0 = inlined_call_operand.vmem [shape: bf16[16,16], index: 0, kind: input, shape index: {}]
  %s1 = inlined_call_operand.hbm [shape: bf16[16,512], index: 1, kind: input, shape index: {}]
  %s2 = inlined_call_operand.vmem [shape: f32[1,512], index: 2, kind: input, shape index: {}]
  %s3 = inlined_call_operand.hbm [shape: bf16[512,512], index: 3, kind: input, shape index: {}]
  %s4 = inlined_call_operand.vmem [shape: f32[1,512], index: 4, kind: input, shape index: {}]
  %s5 = inlined_call_operand.hbm [shape: bf16[512,512], index: 5, kind: input, shape index: {}]
  %s6 = inlined_call_operand.vmem [shape: f32[1,512], index: 6, kind: input, shape index: {}]
  %s7 = inlined_call_operand.hbm [shape: bf16[512,128], index: 7, kind: input, shape index: {}]
  %s8 = inlined_call_operand.vmem [shape: f32[1,128], index: 8, kind: input, shape index: {}]
  %s9 = inlined_call_operand.vmem [shape: f32[16,128], index: 9, kind: output, shape index: {}]
  %s10 = sld [smem:[#allocation0]]
  $region62: #{dqn_forward.1} parent=0
    _
  %s12 = ssub.s32 1, %s10
  %s13 = scalar_select 0, %s12, %s10
  $region1: #{dqn_forward.1} parent=0
    #allocation2 [shape = 'u8[16384]{0}', space=vmem, size = 0x4000, scoped, tag = 'input window, operand 1, single buffered']
    #allocation3 [shape = 's32[1]{0}', space=sflag, size = 0x4, scoped, tag = 'scoped memory for dqn_forward.1']
    #allocation4 [shape = 'u8[524288]{0}', space=vmem, size = 0x80000, scoped, tag = 'input window, operand 3, single buffered']
    #allocation5 [shape = 's32[1]{0}', space=sflag, size = 0x4, scoped, tag = 'scoped memory for dqn_forward.1']
    #allocation6 [shape = 'u8[524288]{0}', space=vmem, size = 0x80000, scoped, tag = 'input window, operand 5, single buffered']
    #allocation7 [shape = 'u8[131072]{0}', space=vmem, size = 0x20000, scoped, tag = 'input window, operand 7, single buffered']
    #allocation8 [shape = 's32[1]{0}', space=sflag, size = 0x4, scoped, tag = 'scoped memory for dqn_forward.1']
    %14 = vsyncpa [#allocation3], 0
    %15 = vsyncpa [#allocation5], 0
    %16 = vsyncpa [#allocation8], 0
    // Predicated region
    $region2: #{dqn_forward.1} parent=1 // pred_check
      _
    $region3: #{dqn_forward.1} parent=1 // pred_check_branch
      %18 = sbr.rel (0) target = $region5
    $region4: #{dqn_forward.1} parent=1 // pred_region
      _
    $region5: #{dqn_forward.1} parent=1 // pred_fallthru
      _
    // Predicated region
    $region6: #{dqn_forward.1} parent=1 // pred_check
      _
    $region7: #{dqn_forward.1} parent=1 // pred_check_branch
      %20 = sbr.rel (0) target = $region9
    $region8: #{dqn_forward.1} parent=1 // pred_region
      %22 = vsyncadd [#allocation3], 0
      %s23 = sshll.u32 %s1, 4
      %s24 = int_to_ptr.hbm [resolvable:$true] %s23
      %s25 = sshll.u32 [#allocation2], 4
      %s26 = int_to_ptr.vmem [resolvable:$true] %s25
      %31 = dma.hbm_to_vmem [thread:$0]  %s24, 512, %s26, [#allocation3], 256, 256, 16
    $region9: #{dqn_forward.1} parent=1 // pred_fallthru
      _
    // Predicated region
    $region10: #{dqn_forward.1} parent=1 // pred_check
      _
    $region11: #{dqn_forward.1} parent=1 // pred_check_branch
      %33 = sbr.rel (0) target = $region13
    $region12: #{dqn_forward.1} parent=1 // pred_region
      _
    $region13: #{dqn_forward.1} parent=1 // pred_fallthru
      _
    // Predicated region
    $region14: #{dqn_forward.1} parent=1 // pred_check
      _
    $region15: #{dqn_forward.1} parent=1 // pred_check_branch
      %35 = sbr.rel (0) target = $region17
    $region16: #{dqn_forward.1} parent=1 // pred_region
      %37 = vsyncadd [#allocation5], 0
      %s38 = sshll.u32 %s3, 4
      %s39 = int_to_ptr.hbm [resolvable:$true] %s38
      %s40 = sshll.u32 [#allocation4], 4
      %s41 = int_to_ptr.vmem [resolvable:$true] %s40
      %46 = dma.hbm_to_vmem [thread:$0]  %s39, 16384, %s41, [#allocation5], 256, 256, 16
    $region17: #{dqn_forward.1} parent=1 // pred_fallthru
      _
    // Predicated region
    $region18: #{dqn_forward.1} parent=1 // pred_check
      _
    $region19: #{dqn_forward.1} parent=1 // pred_check_branch
      %48 = sbr.rel (0) target = $region21
    $region20: #{dqn_forward.1} parent=1 // pred_region
      _
    $region21: #{dqn_forward.1} parent=1 // pred_fallthru
      _
    // Predicated region
    $region22: #{dqn_forward.1} parent=1 // pred_check
      _
    $region23: #{dqn_forward.1} parent=1 // pred_check_branch
      %50 = sbr.rel (0) target = $region25
    $region24: #{dqn_forward.1} parent=1 // pred_region
      %52 = vsyncadd [#allocation5], 0
      %s53 = sshll.u32 %s5, 4
      %s54 = int_to_ptr.hbm [resolvable:$true] %s53
      %s55 = sshll.u32 [#allocation6], 4
      %s56 = int_to_ptr.vmem [resolvable:$true] %s55
      %61 = dma.hbm_to_vmem [thread:$0]  %s54, 16384, %s56, [#allocation5], 256, 256, 16
    $region25: #{dqn_forward.1} parent=1 // pred_fallthru
      _
    // Predicated region
    $region26: #{dqn_forward.1} parent=1 // pred_check
      _
    $region27: #{dqn_forward.1} parent=1 // pred_check_branch
      %63 = sbr.rel (0) target = $region29
    $region28: #{dqn_forward.1} parent=1 // pred_region
      _
    $region29: #{dqn_forward.1} parent=1 // pred_fallthru
      _
    // Predicated region
    $region30: #{dqn_forward.1} parent=1 // pred_check
      _
    $region31: #{dqn_forward.1} parent=1 // pred_check_branch
      %65 = sbr.rel (0) target = $region33
    $region32: #{dqn_forward.1} parent=1 // pred_region
      %67 = vsyncadd [#allocation8], 0
      %s68 = sshll.u32 %s7, 4
      %s69 = int_to_ptr.hbm [resolvable:$true] %s68
      %s70 = sshll.u32 [#allocation7], 4
      %s71 = int_to_ptr.vmem [resolvable:$true] %s70
      %76 = dma.hbm_to_vmem [thread:$0]  %s69, 4096, %s71, [#allocation8], 64, 64, 4
    $region33: #{dqn_forward.1} parent=1 // pred_fallthru
      _
    // Predicated region
    $region34: #{dqn_forward.1} parent=1 // pred_check
      _
    $region35: #{dqn_forward.1} parent=1 // pred_check_branch
      %78 = sbr.rel (0) target = $region37
    $region36: #{dqn_forward.1} parent=1 // pred_region
      _
    $region37: #{dqn_forward.1} parent=1 // pred_fallthru
      _
    // Predicated region
    $region38: #{dqn_forward.1} parent=1 // pred_check
      _
    $region39: #{dqn_forward.1} parent=1 // pred_check_branch
      %80 = sbr.rel (0) target = $region41
    $region40: #{dqn_forward.1} parent=1 // pred_region
      %82 = dma.done [#allocation3], 512
    $region41: #{dqn_forward.1} parent=1 // pred_fallthru
      _
    // Predicated region
    $region42: #{dqn_forward.1} parent=1 // pred_check
      _
    $region43: #{dqn_forward.1} parent=1 // pred_check_branch
      %84 = sbr.rel (0) target = $region45
    $region44: #{dqn_forward.1} parent=1 // pred_region
      %86 = dma.done [#allocation5], 16384
    $region45: #{dqn_forward.1} parent=1 // pred_fallthru
      _
    // Predicated region
    $region46: #{dqn_forward.1} parent=1 // pred_check
      _
    $region47: #{dqn_forward.1} parent=1 // pred_check_branch
      %88 = sbr.rel (0) target = $region49
    $region48: #{dqn_forward.1} parent=1 // pred_region
      %90 = dma.done [#allocation5], 16384
    $region49: #{dqn_forward.1} parent=1 // pred_fallthru
      _
    // Predicated region
    $region50: #{dqn_forward.1} parent=1 // pred_check
      _
    $region51: #{dqn_forward.1} parent=1 // pred_check_branch
      %92 = sbr.rel (0) target = $region53
    $region52: #{dqn_forward.1} parent=1 // pred_region
      %94 = dma.done [#allocation8], 4096
    $region53: #{dqn_forward.1} parent=1 // pred_fallthru
      _
    %v96 = vld [vmem:[%s0] sm:$0xf]
    %v97 = vld [vmem:[%s0 + $0x4] sm:$0xf]
    %v98 = vld [vmem:[#allocation2] sm:$0xff]
    %v99 = vld [vmem:[#allocation2 + $0x8] sm:$0xff]
    %v100 = vld [vmem:[#allocation2 + $0x10] sm:$0xff]
    %v101 = vld [vmem:[#allocation2 + $0x18] sm:$0xff]
    %v102 = vld [vmem:[%s2] sm:$0xf]
    %v104 = vperm.slane %v102, 0
    %v105 = vperm.slane %v102, 1
    %v106 = vperm.slane %v102, 2
    %v107 = vperm.slane %v102, 3
    %v114 = vunpack.c.l.b16 %v96
    %v115 = vunpack.c.l.b16 %v97
    %v116 = vpack.c.b16 %v115, %v114
    %v121 = vunpack.c.l.b16 %v98
    %v122 = vunpack.c.h.b16 %v98
    %v123 = vunpack.c.l.b16 %v99
    %v124 = vunpack.c.h.b16 %v99
    %v125 = vunpack.c.l.b16 %v100
    %v126 = vunpack.c.h.b16 %v100
    %v127 = vunpack.c.l.b16 %v101
    %v128 = vunpack.c.h.b16 %v101
    %v129 = vpack.c.b16 %v125, %v121
    %v130 = vpack.c.b16 %v126, %v122
    %v131 = vpack.c.b16 %v127, %v123
    %v132 = vpack.c.b16 %v128, %v124
    %vm137 = vcmask 130048
    %v139 = vsel %vm137, %v116, 0
    %141 = vmatpush.bf16.msra.mxu0 0
    %142 = vmatpush.bf16.msra.mxu0 0
    %143 = vmatpush.bf16.msra.mxu0 0
    %144 = vmatpush.bf16.msra.mxu0 0
    %145 = vmatpush.bf16.msra.mxu0 0
    %146 = vmatpush.bf16.msra.mxu0 0
    %147 = vmatpush.bf16.msra.mxu0 0
    %148 = vmatpush.bf16.msra.mxu0 %v129
    %149 = vmatmul.bf16.gmra.mxu0 %v139
    %v150 = vpop.f32.mrf.mxu0
    %v151 = vadd.f32 %v104, %v150
    %v152 = vpop.f32.mrf.mxu0
    %v153 = vadd.f32 %v104, %v152
    %154 = vdwg.mxu0
    %155 = vmatpush.bf16.msra.mxu0 0
    %156 = vmatpush.bf16.msra.mxu0 0
    %157 = vmatpush.bf16.msra.mxu0 0
    %158 = vmatpush.bf16.msra.mxu0 0
    %159 = vmatpush.bf16.msra.mxu0 0
    %160 = vmatpush.bf16.msra.mxu0 0
    %161 = vmatpush.bf16.msra.mxu0 0
    %162 = vmatpush.bf16.msra.mxu0 %v130
    %163 = vmatmul.bf16.gmra.mxu0 %v139
    %v164 = vpop.f32.mrf.mxu0
    %v165 = vadd.f32 %v105, %v164
    %v166 = vpop.f32.mrf.mxu0
    %v167 = vadd.f32 %v105, %v166
    %168 = vdwg.mxu0
    %169 = vmatpush.bf16.msra.mxu0 0
    %170 = vmatpush.bf16.msra.mxu0 0
    %171 = vmatpush.bf16.msra.mxu0 0
    %172 = vmatpush.bf16.msra.mxu0 0
    %173 = vmatpush.bf16.msra.mxu0 0
    %174 = vmatpush.bf16.msra.mxu0 0
    %175 = vmatpush.bf16.msra.mxu0 0
    %176 = vmatpush.bf16.msra.mxu0 %v131
    %177 = vmatmul.bf16.gmra.mxu0 %v139
    %v178 = vpop.f32.mrf.mxu0
    %v179 = vadd.f32 %v106, %v178
    %v180 = vpop.f32.mrf.mxu0
    %v181 = vadd.f32 %v106, %v180
    %182 = vdwg.mxu0
    %183 = vmatpush.bf16.msra.mxu0 0
    %184 = vmatpush.bf16.msra.mxu0 0
    %185 = vmatpush.bf16.msra.mxu0 0
    %186 = vmatpush.bf16.msra.mxu0 0
    %187 = vmatpush.bf16.msra.mxu0 0
    %188 = vmatpush.bf16.msra.mxu0 0
    %189 = vmatpush.bf16.msra.mxu0 0
    %190 = vmatpush.bf16.msra.mxu0 %v132
    %191 = vmatmul.bf16.gmra.mxu0 %v139
    %v192 = vpop.f32.mrf.mxu0
    %v193 = vadd.f32 %v107, %v192
    %v194 = vpop.f32.mrf.mxu0
    %v195 = vadd.f32 %v107, %v194
    %196 = vdwg.mxu0
    %v197 = vmax.f32 %v151, 0.0
    %v198 = vmax.f32 %v165, 0.0
    %v199 = vmax.f32 %v179, 0.0
    %v200 = vmax.f32 %v193, 0.0
    %v201 = vmax.f32 %v153, 0.0
    %v202 = vmax.f32 %v167, 0.0
    %v203 = vmax.f32 %v181, 0.0
    %v204 = vmax.f32 %v195, 0.0
    %v205 = vpack.c.bf16 %v201, %v197
    %v206 = vpack.c.bf16 %v202, %v198
    %v207 = vpack.c.bf16 %v203, %v199
    %v208 = vpack.c.bf16 %v204, %v200
    %v209 = vld [vmem:[#allocation4] sm:$0xff]
    %v210 = vld [vmem:[#allocation4 + $0x8] sm:$0xff]
    %v211 = vld [vmem:[#allocation4 + $0x10] sm:$0xff]
    %v212 = vld [vmem:[#allocation4 + $0x18] sm:$0xff]
    %v213 = vld [vmem:[#allocation4 + $0x20] sm:$0xff]
    %v214 = vld [vmem:[#allocation4 + $0x28] sm:$0xff]
    %v215 = vld [vmem:[#allocation4 + $0x30] sm:$0xff]
    %v216 = vld [vmem:[#allocation4 + $0x38] sm:$0xff]
    %v217 = vld [vmem:[#allocation4 + $0x40] sm:$0xff]
    %v218 = vld [vmem:[#allocation4 + $0x48] sm:$0xff]
    %v219 = vld [vmem:[#allocation4 + $0x50] sm:$0xff]
    %v220 = vld [vmem:[#allocation4 + $0x58] sm:$0xff]
    %v221 = vld [vmem:[#allocation4 + $0x60] sm:$0xff]
    %v222 = vld [vmem:[#allocation4 + $0x68] sm:$0xff]
    %v223 = vld [vmem:[#allocation4 + $0x70] sm:$0xff]
    %v224 = vld [vmem:[#allocation4 + $0x78] sm:$0xff]
    %v225 = vld [vmem:[#allocation4 + $0x80] sm:$0xff]
    %v226 = vld [vmem:[#allocation4 + $0x88] sm:$0xff]
    %v227 = vld [vmem:[#allocation4 + $0x90] sm:$0xff]
    %v228 = vld [vmem:[#allocation4 + $0x98] sm:$0xff]
    %v229 = vld [vmem:[#allocation4 + $0xa0] sm:$0xff]
    %v230 = vld [vmem:[#allocation4 + $0xa8] sm:$0xff]
    %v231 = vld [vmem:[#allocation4 + $0xb0] sm:$0xff]
    %v232 = vld [vmem:[#allocation4 + $0xb8] sm:$0xff]
    %v233 = vld [vmem:[#allocation4 + $0xc0] sm:$0xff]
    %v234 = vld [vmem:[#allocation4 + $0xc8] sm:$0xff]
    %v235 = vld [vmem:[#allocation4 + $0xd0] sm:$0xff]
    %v236 = vld [vmem:[#allocation4 + $0xd8] sm:$0xff]
    %v237 = vld [vmem:[#allocation4 + $0xe0] sm:$0xff]
    %v238 = vld [vmem:[#allocation4 + $0xe8] sm:$0xff]
    %v239 = vld [vmem:[#allocation4 + $0xf0] sm:$0xff]
    %v240 = vld [vmem:[#allocation4 + $0xf8] sm:$0xff]
    %v241 = vld [vmem:[#allocation4 + $0x100] sm:$0xff]
    %v242 = vld [vmem:[#allocation4 + $0x108] sm:$0xff]
    %v243 = vld [vmem:[#allocation4 + $0x110] sm:$0xff]
    %v244 = vld [vmem:[#allocation4 + $0x118] sm:$0xff]
    %v245 = vld [vmem:[#allocation4 + $0x120] sm:$0xff]
    %v246 = vld [vmem:[#allocation4 + $0x128] sm:$0xff]
    %v247 = vld [vmem:[#allocation4 + $0x130] sm:$0xff]
    %v248 = vld [vmem:[#allocation4 + $0x138] sm:$0xff]
    %v249 = vld [vmem:[#allocation4 + $0x140] sm:$0xff]
    %v250 = vld [vmem:[#allocation4 + $0x148] sm:$0xff]
    %v251 = vld [vmem:[#allocation4 + $0x150] sm:$0xff]
    %v252 = vld [vmem:[#allocation4 + $0x158] sm:$0xff]
    %v253 = vld [vmem:[#allocation4 + $0x160] sm:$0xff]
    %v254 = vld [vmem:[#allocation4 + $0x168] sm:$0xff]
    %v255 = vld [vmem:[#allocation4 + $0x170] sm:$0xff]
    %v256 = vld [vmem:[#allocation4 + $0x178] sm:$0xff]
    %v257 = vld [vmem:[#allocation4 + $0x180] sm:$0xff]
    %v258 = vld [vmem:[#allocation4 + $0x188] sm:$0xff]
    %v259 = vld [vmem:[#allocation4 + $0x190] sm:$0xff]
    %v260 = vld [vmem:[#allocation4 + $0x198] sm:$0xff]
    %v261 = vld [vmem:[#allocation4 + $0x1a0] sm:$0xff]
    %v262 = vld [vmem:[#allocation4 + $0x1a8] sm:$0xff]
    %v263 = vld [vmem:[#allocation4 + $0x1b0] sm:$0xff]
    %v264 = vld [vmem:[#allocation4 + $0x1b8] sm:$0xff]
    %v265 = vld [vmem:[#allocation4 + $0x1c0] sm:$0xff]
    %v266 = vld [vmem:[#allocation4 + $0x1c8] sm:$0xff]
    %v267 = vld [vmem:[#allocation4 + $0x1d0] sm:$0xff]
    %v268 = vld [vmem:[#allocation4 + $0x1d8] sm:$0xff]
    %v269 = vld [vmem:[#allocation4 + $0x1e0] sm:$0xff]
    %v270 = vld [vmem:[#allocation4 + $0x1e8] sm:$0xff]
    %v271 = vld [vmem:[#allocation4 + $0x1f0] sm:$0xff]
    %v272 = vld [vmem:[#allocation4 + $0x1f8] sm:$0xff]
    %v273 = vld [vmem:[#allocation4 + $0x200] sm:$0xff]
    %v274 = vld [vmem:[#allocation4 + $0x208] sm:$0xff]
    %v275 = vld [vmem:[#allocation4 + $0x210] sm:$0xff]
    %v276 = vld [vmem:[#allocation4 + $0x218] sm:$0xff]
    %v277 = vld [vmem:[#allocation4 + $0x220] sm:$0xff]
    %v278 = vld [vmem:[#allocation4 + $0x228] sm:$0xff]
    %v279 = vld [vmem:[#allocation4 + $0x230] sm:$0xff]
    %v280 = vld [vmem:[#allocation4 + $0x238] sm:$0xff]
    %v281 = vld [vmem:[#allocation4 + $0x240] sm:$0xff]
    %v282 = vld [vmem:[#allocation4 + $0x248] sm:$0xff]
    %v283 = vld [vmem:[#allocation4 + $0x250] sm:$0xff]
    %v284 = vld [vmem:[#allocation4 + $0x258] sm:$0xff]
    %v285 = vld [vmem:[#allocation4 + $0x260] sm:$0xff]
    %v286 = vld [vmem:[#allocation4 + $0x268] sm:$0xff]
    %v287 = vld [vmem:[#allocation4 + $0x270] sm:$0xff]
    %v288 = vld [vmem:[#allocation4 + $0x278] sm:$0xff]
    %v289 = vld [vmem:[#allocation4 + $0x280] sm:$0xff]
    %v290 = vld [vmem:[#allocation4 + $0x288] sm:$0xff]
    %v291 = vld [vmem:[#allocation4 + $0x290] sm:$0xff]
    %v292 = vld [vmem:[#allocation4 + $0x298] sm:$0xff]
    %v293 = vld [vmem:[#allocation4 + $0x2a0] sm:$0xff]
    %v294 = vld [vmem:[#allocation4 + $0x2a8] sm:$0xff]
    %v295 = vld [vmem:[#allocation4 + $0x2b0] sm:$0xff]
    %v296 = vld [vmem:[#allocation4 + $0x2b8] sm:$0xff]
    %v297 = vld [vmem:[#allocation4 + $0x2c0] sm:$0xff]
    %v298 = vld [vmem:[#allocation4 + $0x2c8] sm:$0xff]
    %v299 = vld [vmem:[#allocation4 + $0x2d0] sm:$0xff]
    %v300 = vld [vmem:[#allocation4 + $0x2d8] sm:$0xff]
    %v301 = vld [vmem:[#allocation4 + $0x2e0] sm:$0xff]
    %v302 = vld [vmem:[#allocation4 + $0x2e8] sm:$0xff]
    %v303 = vld [vmem:[#allocation4 + $0x2f0] sm:$0xff]
    %v304 = vld [vmem:[#allocation4 + $0x2f8] sm:$0xff]
    %v305 = vld [vmem:[#allocation4 + $0x300] sm:$0xff]
    %v306 = vld [vmem:[#allocation4 + $0x308] sm:$0xff]
    %v307 = vld [vmem:[#allocation4 + $0x310] sm:$0xff]
    %v308 = vld [vmem:[#allocation4 + $0x318] sm:$0xff]
    %v309 = vld [vmem:[#allocation4 + $0x320] sm:$0xff]
    %v310 = vld [vmem:[#allocation4 + $0x328] sm:$0xff]
    %v311 = vld [vmem:[#allocation4 + $0x330] sm:$0xff]
    %v312 = vld [vmem:[#allocation4 + $0x338] sm:$0xff]
    %v313 = vld [vmem:[#allocation4 + $0x340] sm:$0xff]
    %v314 = vld [vmem:[#allocation4 + $0x348] sm:$0xff]
    %v315 = vld [vmem:[#allocation4 + $0x350] sm:$0xff]
    %v316 = vld [vmem:[#allocation4 + $0x358] sm:$0xff]
    %v317 = vld [vmem:[#allocation4 + $0x360] sm:$0xff]
    %v318 = vld [vmem:[#allocation4 + $0x368] sm:$0xff]
    %v319 = vld [vmem:[#allocation4 + $0x370] sm:$0xff]
    %v320 = vld [vmem:[#allocation4 + $0x378] sm:$0xff]
    %v321 = vld [vmem:[#allocation4 + $0x380] sm:$0xff]
    %v322 = vld [vmem:[#allocation4 + $0x388] sm:$0xff]
    %v323 = vld [vmem:[#allocation4 + $0x390] sm:$0xff]
    %v324 = vld [vmem:[#allocation4 + $0x398] sm:$0xff]
    %v325 = vld [vmem:[#allocation4 + $0x3a0] sm:$0xff]
    %v326 = vld [vmem:[#allocation4 + $0x3a8] sm:$0xff]
    %v327 = vld [vmem:[#allocation4 + $0x3b0] sm:$0xff]
    %v328 = vld [vmem:[#allocation4 + $0x3b8] sm:$0xff]
    %v329 = vld [vmem:[#allocation4 + $0x3c0] sm:$0xff]
    %v330 = vld [vmem:[#allocation4 + $0x3c8] sm:$0xff]
    %v331 = vld [vmem:[#allocation4 + $0x3d0] sm:$0xff]
    %v332 = vld [vmem:[#allocation4 + $0x3d8] sm:$0xff]
    %v333 = vld [vmem:[#allocation4 + $0x3e0] sm:$0xff]
    %v334 = vld [vmem:[#allocation4 + $0x3e8] sm:$0xff]
    %v335 = vld [vmem:[#allocation4 + $0x3f0] sm:$0xff]
    %v336 = vld [vmem:[#allocation4 + $0x3f8] sm:$0xff]
    %v337 = vld [vmem:[%s4] sm:$0xf]
    %v339 = vperm.slane %v337, 0
    %v340 = vperm.slane %v337, 1
    %v341 = vperm.slane %v337, 2
    %v342 = vperm.slane %v337, 3
    %v475 = vunpack.c.l.b16 %v209
    %v476 = vunpack.c.h.b16 %v209
    %v477 = vunpack.c.l.b16 %v210
    %v478 = vunpack.c.h.b16 %v210
    %v479 = vunpack.c.l.b16 %v211
    %v480 = vunpack.c.h.b16 %v211
    %v481 = vunpack.c.l.b16 %v212
    %v482 = vunpack.c.h.b16 %v212
    %v483 = vunpack.c.l.b16 %v213
    %v484 = vunpack.c.h.b16 %v213
    %v485 = vunpack.c.l.b16 %v214
    %v486 = vunpack.c.h.b16 %v214
    %v487 = vunpack.c.l.b16 %v215
    %v488 = vunpack.c.h.b16 %v215
    %v489 = vunpack.c.l.b16 %v216
    %v490 = vunpack.c.h.b16 %v216
    %v491 = vunpack.c.l.b16 %v217
    %v492 = vunpack.c.h.b16 %v217
    %v493 = vunpack.c.l.b16 %v218
    %v494 = vunpack.c.h.b16 %v218
    %v495 = vunpack.c.l.b16 %v219
    %v496 = vunpack.c.h.b16 %v219
    %v497 = vunpack.c.l.b16 %v220
    %v498 = vunpack.c.h.b16 %v220
    %v499 = vunpack.c.l.b16 %v221
    %v500 = vunpack.c.h.b16 %v221
    %v501 = vunpack.c.l.b16 %v222
    %v502 = vunpack.c.h.b16 %v222
    %v503 = vunpack.c.l.b16 %v223
    %v504 = vunpack.c.h.b16 %v223
    %v505 = vunpack.c.l.b16 %v224
    %v506 = vunpack.c.h.b16 %v224
    %v507 = vunpack.c.l.b16 %v225
    %v508 = vunpack.c.h.b16 %v225
    %v509 = vunpack.c.l.b16 %v226
    %v510 = vunpack.c.h.b16 %v226
    %v511 = vunpack.c.l.b16 %v227
    %v512 = vunpack.c.h.b16 %v227
    %v513 = vunpack.c.l.b16 %v228
    %v514 = vunpack.c.h.b16 %v228
    %v515 = vunpack.c.l.b16 %v229
    %v516 = vunpack.c.h.b16 %v229
    %v517 = vunpack.c.l.b16 %v230
    %v518 = vunpack.c.h.b16 %v230
    %v519 = vunpack.c.l.b16 %v231
    %v520 = vunpack.c.h.b16 %v231
    %v521 = vunpack.c.l.b16 %v232
    %v522 = vunpack.c.h.b16 %v232
    %v523 = vunpack.c.l.b16 %v233
    %v524 = vunpack.c.h.b16 %v233
    %v525 = vunpack.c.l.b16 %v234
    %v526 = vunpack.c.h.b16 %v234
    %v527 = vunpack.c.l.b16 %v235
    %v528 = vunpack.c.h.b16 %v235
    %v529 = vunpack.c.l.b16 %v236
    %v530 = vunpack.c.h.b16 %v236
    %v531 = vunpack.c.l.b16 %v237
    %v532 = vunpack.c.h.b16 %v237
    %v533 = vunpack.c.l.b16 %v238
    %v534 = vunpack.c.h.b16 %v238
    %v535 = vunpack.c.l.b16 %v239
    %v536 = vunpack.c.h.b16 %v239
    %v537 = vunpack.c.l.b16 %v240
    %v538 = vunpack.c.h.b16 %v240
    %v539 = vunpack.c.l.b16 %v241
    %v540 = vunpack.c.h.b16 %v241
    %v541 = vunpack.c.l.b16 %v242
    %v542 = vunpack.c.h.b16 %v242
    %v543 = vunpack.c.l.b16 %v243
    %v544 = vunpack.c.h.b16 %v243
    %v545 = vunpack.c.l.b16 %v244
    %v546 = vunpack.c.h.b16 %v244
    %v547 = vunpack.c.l.b16 %v245
    %v548 = vunpack.c.h.b16 %v245
    %v549 = vunpack.c.l.b16 %v246
    %v550 = vunpack.c.h.b16 %v246
    %v551 = vunpack.c.l.b16 %v247
    %v552 = vunpack.c.h.b16 %v247
    %v553 = vunpack.c.l.b16 %v248
    %v554 = vunpack.c.h.b16 %v248
    %v555 = vunpack.c.l.b16 %v249
    %v556 = vunpack.c.h.b16 %v249
    %v557 = vunpack.c.l.b16 %v250
    %v558 = vunpack.c.h.b16 %v250
    %v559 = vunpack.c.l.b16 %v251
    %v560 = vunpack.c.h.b16 %v251
    %v561 = vunpack.c.l.b16 %v252
    %v562 = vunpack.c.h.b16 %v252
    %v563 = vunpack.c.l.b16 %v253
    %v564 = vunpack.c.h.b16 %v253
    %v565 = vunpack.c.l.b16 %v254
    %v566 = vunpack.c.h.b16 %v254
    %v567 = vunpack.c.l.b16 %v255
    %v568 = vunpack.c.h.b16 %v255
    %v569 = vunpack.c.l.b16 %v256
    %v570 = vunpack.c.h.b16 %v256
    %v571 = vunpack.c.l.b16 %v257
    %v572 = vunpack.c.h.b16 %v257
    %v573 = vunpack.c.l.b16 %v258
    %v574 = vunpack.c.h.b16 %v258
    %v575 = vunpack.c.l.b16 %v259
    %v576 = vunpack.c.h.b16 %v259
    %v577 = vunpack.c.l.b16 %v260
    %v578 = vunpack.c.h.b16 %v260
    %v579 = vunpack.c.l.b16 %v261
    %v580 = vunpack.c.h.b16 %v261
    %v581 = vunpack.c.l.b16 %v262
    %v582 = vunpack.c.h.b16 %v262
    %v583 = vunpack.c.l.b16 %v263
    %v584 = vunpack.c.h.b16 %v263
    %v585 = vunpack.c.l.b16 %v264
    %v586 = vunpack.c.h.b16 %v264
    %v587 = vunpack.c.l.b16 %v265
    %v588 = vunpack.c.h.b16 %v265
    %v589 = vunpack.c.l.b16 %v266
    %v590 = vunpack.c.h.b16 %v266
    %v591 = vunpack.c.l.b16 %v267
    %v592 = vunpack.c.h.b16 %v267
    %v593 = vunpack.c.l.b16 %v268
    %v594 = vunpack.c.h.b16 %v268
    %v595 = vunpack.c.l.b16 %v269
    %v596 = vunpack.c.h.b16 %v269
    %v597 = vunpack.c.l.b16 %v270
    %v598 = vunpack.c.h.b16 %v270
    %v599 = vunpack.c.l.b16 %v271
    %v600 = vunpack.c.h.b16 %v271
    %v601 = vunpack.c.l.b16 %v272
    %v602 = vunpack.c.h.b16 %v272
    %v603 = vunpack.c.l.b16 %v273
    %v604 = vunpack.c.h.b16 %v273
    %v605 = vunpack.c.l.b16 %v274
    %v606 = vunpack.c.h.b16 %v274
    %v607 = vunpack.c.l.b16 %v275
    %v608 = vunpack.c.h.b16 %v275
    %v609 = vunpack.c.l.b16 %v276
    %v610 = vunpack.c.h.b16 %v276
    %v611 = vunpack.c.l.b16 %v277
    %v612 = vunpack.c.h.b16 %v277
    %v613 = vunpack.c.l.b16 %v278
    %v614 = vunpack.c.h.b16 %v278
    %v615 = vunpack.c.l.b16 %v279
    %v616 = vunpack.c.h.b16 %v279
    %v617 = vunpack.c.l.b16 %v280
    %v618 = vunpack.c.h.b16 %v280
    %v619 = vunpack.c.l.b16 %v281
    %v620 = vunpack.c.h.b16 %v281
    %v621 = vunpack.c.l.b16 %v282
    %v622 = vunpack.c.h.b16 %v282
    %v623 = vunpack.c.l.b16 %v283
    %v624 = vunpack.c.h.b16 %v283
    %v625 = vunpack.c.l.b16 %v284
    %v626 = vunpack.c.h.b16 %v284
    %v627 = vunpack.c.l.b16 %v285
    %v628 = vunpack.c.h.b16 %v285
    %v629 = vunpack.c.l.b16 %v286
    %v630 = vunpack.c.h.b16 %v286
    %v631 = vunpack.c.l.b16 %v287
    %v632 = vunpack.c.h.b16 %v287
    %v633 = vunpack.c.l.b16 %v288
    %v634 = vunpack.c.h.b16 %v288
    %v635 = vunpack.c.l.b16 %v289
    %v636 = vunpack.c.h.b16 %v289
    %v637 = vunpack.c.l.b16 %v290
    %v638 = vunpack.c.h.b16 %v290
    %v639 = vunpack.c.l.b16 %v291
    %v640 = vunpack.c.h.b16 %v291
    %v641 = vunpack.c.l.b16 %v292
    %v642 = vunpack.c.h.b16 %v292
    %v643 = vunpack.c.l.b16 %v293
    %v644 = vunpack.c.h.b16 %v293
    %v645 = vunpack.c.l.b16 %v294
    %v646 = vunpack.c.h.b16 %v294
    %v647 = vunpack.c.l.b16 %v295
    %v648 = vunpack.c.h.b16 %v295
    %v649 = vunpack.c.l.b16 %v296
    %v650 = vunpack.c.h.b16 %v296
    %v651 = vunpack.c.l.b16 %v297
    %v652 = vunpack.c.h.b16 %v297
    %v653 = vunpack.c.l.b16 %v298
    %v654 = vunpack.c.h.b16 %v298
    %v655 = vunpack.c.l.b16 %v299
    %v656 = vunpack.c.h.b16 %v299
    %v657 = vunpack.c.l.b16 %v300
    %v658 = vunpack.c.h.b16 %v300
    %v659 = vunpack.c.l.b16 %v301
    %v660 = vunpack.c.h.b16 %v301
    %v661 = vunpack.c.l.b16 %v302
    %v662 = vunpack.c.h.b16 %v302
    %v663 = vunpack.c.l.b16 %v303
    %v664 = vunpack.c.h.b16 %v303
    %v665 = vunpack.c.l.b16 %v304
    %v666 = vunpack.c.h.b16 %v304
    %v667 = vunpack.c.l.b16 %v305
    %v668 = vunpack.c.h.b16 %v305
    %v669 = vunpack.c.l.b16 %v306
    %v670 = vunpack.c.h.b16 %v306
    %v671 = vunpack.c.l.b16 %v307
    %v672 = vunpack.c.h.b16 %v307
    %v673 = vunpack.c.l.b16 %v308
    %v674 = vunpack.c.h.b16 %v308
    %v675 = vunpack.c.l.b16 %v309
    %v676 = vunpack.c.h.b16 %v309
    %v677 = vunpack.c.l.b16 %v310
    %v678 = vunpack.c.h.b16 %v310
    %v679 = vunpack.c.l.b16 %v311
    %v680 = vunpack.c.h.b16 %v311
    %v681 = vunpack.c.l.b16 %v312
    %v682 = vunpack.c.h.b16 %v312
    %v683 = vunpack.c.l.b16 %v313
    %v684 = vunpack.c.h.b16 %v313
    %v685 = vunpack.c.l.b16 %v314
    %v686 = vunpack.c.h.b16 %v314
    %v687 = vunpack.c.l.b16 %v315
    %v688 = vunpack.c.h.b16 %v315
    %v689 = vunpack.c.l.b16 %v316
    %v690 = vunpack.c.h.b16 %v316
    %v691 = vunpack.c.l.b16 %v317
    %v692 = vunpack.c.h.b16 %v317
    %v693 = vunpack.c.l.b16 %v318
    %v694 = vunpack.c.h.b16 %v318
    %v695 = vunpack.c.l.b16 %v319
    %v696 = vunpack.c.h.b16 %v319
    %v697 = vunpack.c.l.b16 %v320
    %v698 = vunpack.c.h.b16 %v320
    %v699 = vunpack.c.l.b16 %v321
    %v700 = vunpack.c.h.b16 %v321
    %v701 = vunpack.c.l.b16 %v322
    %v702 = vunpack.c.h.b16 %v322
    %v703 = vunpack.c.l.b16 %v323
    %v704 = vunpack.c.h.b16 %v323
    %v705 = vunpack.c.l.b16 %v324
    %v706 = vunpack.c.h.b16 %v324
    %v707 = vunpack.c.l.b16 %v325
    %v708 = vunpack.c.h.b16 %v325
    %v709 = vunpack.c.l.b16 %v326
    %v710 = vunpack.c.h.b16 %v326
    %v711 = vunpack.c.l.b16 %v327
    %v712 = vunpack.c.h.b16 %v327
    %v713 = vunpack.c.l.b16 %v328
    %v714 = vunpack.c.h.b16 %v328
    %v715 = vunpack.c.l.b16 %v329
    %v716 = vunpack.c.h.b16 %v329
    %v717 = vunpack.c.l.b16 %v330
    %v718 = vunpack.c.h.b16 %v330
    %v719 = vunpack.c.l.b16 %v331
    %v720 = vunpack.c.h.b16 %v331
    %v721 = vunpack.c.l.b16 %v332
    %v722 = vunpack.c.h.b16 %v332
    %v723 = vunpack.c.l.b16 %v333
    %v724 = vunpack.c.h.b16 %v333
    %v725 = vunpack.c.l.b16 %v334
    %v726 = vunpack.c.h.b16 %v334
    %v727 = vunpack.c.l.b16 %v335
    %v728 = vunpack.c.h.b16 %v335
    %v729 = vunpack.c.l.b16 %v336
    %v730 = vunpack.c.h.b16 %v336
    %v731 = vpack.c.b16 %v479, %v475
    %v732 = vpack.c.b16 %v480, %v476
    %v733 = vpack.c.b16 %v481, %v477
    %v734 = vpack.c.b16 %v482, %v478
    %v735 = vpack.c.b16 %v487, %v483
    %v736 = vpack.c.b16 %v488, %v484
    %v737 = vpack.c.b16 %v489, %v485
    %v738 = vpack.c.b16 %v490, %v486
    %v739 = vpack.c.b16 %v495, %v491
    %v740 = vpack.c.b16 %v496, %v492
    %v741 = vpack.c.b16 %v497, %v493
    %v742 = vpack.c.b16 %v498, %v494
    %v743 = vpack.c.b16 %v503, %v499
    %v744 = vpack.c.b16 %v504, %v500
    %v745 = vpack.c.b16 %v505, %v501
    %v746 = vpack.c.b16 %v506, %v502
    %v747 = vpack.c.b16 %v511, %v507
    %v748 = vpack.c.b16 %v512, %v508
    %v749 = vpack.c.b16 %v513, %v509
    %v750 = vpack.c.b16 %v514, %v510
    %v751 = vpack.c.b16 %v519, %v515
    %v752 = vpack.c.b16 %v520, %v516
    %v753 = vpack.c.b16 %v521, %v517
    %v754 = vpack.c.b16 %v522, %v518
    %v755 = vpack.c.b16 %v527, %v523
    %v756 = vpack.c.b16 %v528, %v524
    %v757 = vpack.c.b16 %v529, %v525
    %v758 = vpack.c.b16 %v530, %v526
    %v759 = vpack.c.b16 %v535, %v531
    %v760 = vpack.c.b16 %v536, %v532
    %v761 = vpack.c.b16 %v537, %v533
    %v762 = vpack.c.b16 %v538, %v534
    %v763 = vpack.c.b16 %v543, %v539
    %v764 = vpack.c.b16 %v544, %v540
    %v765 = vpack.c.b16 %v545, %v541
    %v766 = vpack.c.b16 %v546, %v542
    %v767 = vpack.c.b16 %v551, %v547
    %v768 = vpack.c.b16 %v552, %v548
    %v769 = vpack.c.b16 %v553, %v549
    %v770 = vpack.c.b16 %v554, %v550
    %v771 = vpack.c.b16 %v559, %v555
    %v772 = vpack.c.b16 %v560, %v556
    %v773 = vpack.c.b16 %v561, %v557
    %v774 = vpack.c.b16 %v562, %v558
    %v775 = vpack.c.b16 %v567, %v563
    %v776 = vpack.c.b16 %v568, %v564
    %v777 = vpack.c.b16 %v569, %v565
    %v778 = vpack.c.b16 %v570, %v566
    %v779 = vpack.c.b16 %v575, %v571
    %v780 = vpack.c.b16 %v576, %v572
    %v781 = vpack.c.b16 %v577, %v573
    %v782 = vpack.c.b16 %v578, %v574
    %v783 = vpack.c.b16 %v583, %v579
    %v784 = vpack.c.b16 %v584, %v580
    %v785 = vpack.c.b16 %v585, %v581
    %v786 = vpack.c.b16 %v586, %v582
    %v787 = vpack.c.b16 %v591, %v587
    %v788 = vpack.c.b16 %v592, %v588
    %v789 = vpack.c.b16 %v593, %v589
    %v790 = vpack.c.b16 %v594, %v590
    %v791 = vpack.c.b16 %v599, %v595
    %v792 = vpack.c.b16 %v600, %v596
    %v793 = vpack.c.b16 %v601, %v597
    %v794 = vpack.c.b16 %v602, %v598
    %v795 = vpack.c.b16 %v607, %v603
    %v796 = vpack.c.b16 %v608, %v604
    %v797 = vpack.c.b16 %v609, %v605
    %v798 = vpack.c.b16 %v610, %v606
    %v799 = vpack.c.b16 %v615, %v611
    %v800 = vpack.c.b16 %v616, %v612
    %v801 = vpack.c.b16 %v617, %v613
    %v802 = vpack.c.b16 %v618, %v614
    %v803 = vpack.c.b16 %v623, %v619
    %v804 = vpack.c.b16 %v624, %v620
    %v805 = vpack.c.b16 %v625, %v621
    %v806 = vpack.c.b16 %v626, %v622
    %v807 = vpack.c.b16 %v631, %v627
    %v808 = vpack.c.b16 %v632, %v628
    %v809 = vpack.c.b16 %v633, %v629
    %v810 = vpack.c.b16 %v634, %v630
    %v811 = vpack.c.b16 %v639, %v635
    %v812 = vpack.c.b16 %v640, %v636
    %v813 = vpack.c.b16 %v641, %v637
    %v814 = vpack.c.b16 %v642, %v638
    %v815 = vpack.c.b16 %v647, %v643
    %v816 = vpack.c.b16 %v648, %v644
    %v817 = vpack.c.b16 %v649, %v645
    %v818 = vpack.c.b16 %v650, %v646
    %v819 = vpack.c.b16 %v655, %v651
    %v820 = vpack.c.b16 %v656, %v652
    %v821 = vpack.c.b16 %v657, %v653
    %v822 = vpack.c.b16 %v658, %v654
    %v823 = vpack.c.b16 %v663, %v659
    %v824 = vpack.c.b16 %v664, %v660
    %v825 = vpack.c.b16 %v665, %v661
    %v826 = vpack.c.b16 %v666, %v662
    %v827 = vpack.c.b16 %v671, %v667
    %v828 = vpack.c.b16 %v672, %v668
    %v829 = vpack.c.b16 %v673, %v669
    %v830 = vpack.c.b16 %v674, %v670
    %v831 = vpack.c.b16 %v679, %v675
    %v832 = vpack.c.b16 %v680, %v676
    %v833 = vpack.c.b16 %v681, %v677
    %v834 = vpack.c.b16 %v682, %v678
    %v835 = vpack.c.b16 %v687, %v683
    %v836 = vpack.c.b16 %v688, %v684
    %v837 = vpack.c.b16 %v689, %v685
    %v838 = vpack.c.b16 %v690, %v686
    %v839 = vpack.c.b16 %v695, %v691
    %v840 = vpack.c.b16 %v696, %v692
    %v841 = vpack.c.b16 %v697, %v693
    %v842 = vpack.c.b16 %v698, %v694
    %v843 = vpack.c.b16 %v703, %v699
    %v844 = vpack.c.b16 %v704, %v700
    %v845 = vpack.c.b16 %v705, %v701
    %v846 = vpack.c.b16 %v706, %v702
    %v847 = vpack.c.b16 %v711, %v707
    %v848 = vpack.c.b16 %v712, %v708
    %v849 = vpack.c.b16 %v713, %v709
    %v850 = vpack.c.b16 %v714, %v710
    %v851 = vpack.c.b16 %v719, %v715
    %v852 = vpack.c.b16 %v720, %v716
    %v853 = vpack.c.b16 %v721, %v717
    %v854 = vpack.c.b16 %v722, %v718
    %v855 = vpack.c.b16 %v727, %v723
    %v856 = vpack.c.b16 %v728, %v724
    %v857 = vpack.c.b16 %v729, %v725
    %v858 = vpack.c.b16 %v730, %v726
    %987 = vmatpush.bf16.msra.mxu0 %v759
    %988 = vmatpush.bf16.msra.mxu0 %v755
    %989 = vmatpush.bf16.msra.mxu0 %v751
    %990 = vmatpush.bf16.msra.mxu0 %v747
    %991 = vmatpush.bf16.msra.mxu0 %v743
    %992 = vmatpush.bf16.msra.mxu0 %v739
    %993 = vmatpush.bf16.msra.mxu0 %v735
    %994 = vmatpush.bf16.msra.mxu0 %v731
    %995 = vmatmul.bf16.gmra.mxu0 %v205
    %v996 = vpop.f32.mrf.mxu0
    %v997 = vadd.f32 %v339, %v996
    %v998 = vpop.f32.mrf.mxu0
    %v999 = vadd.f32 %v339, %v998
    %1000 = vdwg.mxu0
    %1001 = vmatpush.bf16.msra.mxu0 %v791
    %1002 = vmatpush.bf16.msra.mxu0 %v787
    %1003 = vmatpush.bf16.msra.mxu0 %v783
    %1004 = vmatpush.bf16.msra.mxu0 %v779
    %1005 = vmatpush.bf16.msra.mxu0 %v775
    %1006 = vmatpush.bf16.msra.mxu0 %v771
    %1007 = vmatpush.bf16.msra.mxu0 %v767
    %1008 = vmatpush.bf16.msra.mxu0 %v763
    %1009 = vmatmul.bf16.gmra.mxu0 %v206
    %v1010 = vpop.f32.mrf.mxu0
    %v1011 = vadd.f32 %v997, %v1010
    %v1012 = vpop.f32.mrf.mxu0
    %v1013 = vadd.f32 %v999, %v1012
    %1014 = vdwg.mxu0
    %1015 = vmatpush.bf16.msra.mxu0 %v823
    %1016 = vmatpush.bf16.msra.mxu0 %v819
    %1017 = vmatpush.bf16.msra.mxu0 %v815
    %1018 = vmatpush.bf16.msra.mxu0 %v811
    %1019 = vmatpush.bf16.msra.mxu0 %v807
    %1020 = vmatpush.bf16.msra.mxu0 %v803
    %1021 = vmatpush.bf16.msra.mxu0 %v799
    %1022 = vmatpush.bf16.msra.mxu0 %v795
    %1023 = vmatmul.bf16.gmra.mxu0 %v207
    %v1024 = vpop.f32.mrf.mxu0
    %v1025 = vadd.f32 %v1011, %v1024
    %v1026 = vpop.f32.mrf.mxu0
    %v1027 = vadd.f32 %v1013, %v1026
    %1028 = vdwg.mxu0
    %1029 = vmatpush.bf16.msra.mxu0 %v855
    %1030 = vmatpush.bf16.msra.mxu0 %v851
    %1031 = vmatpush.bf16.msra.mxu0 %v847
    %1032 = vmatpush.bf16.msra.mxu0 %v843
    %1033 = vmatpush.bf16.msra.mxu0 %v839
    %1034 = vmatpush.bf16.msra.mxu0 %v835
    %1035 = vmatpush.bf16.msra.mxu0 %v831
    %1036 = vmatpush.bf16.msra.mxu0 %v827
    %1037 = vmatmul.bf16.gmra.mxu0 %v208
    %v1038 = vpop.f32.mrf.mxu0
    %v1039 = vadd.f32 %v1025, %v1038
    %v1040 = vpop.f32.mrf.mxu0
    %v1041 = vadd.f32 %v1027, %v1040
    %1042 = vdwg.mxu0
    %1043 = vmatpush.bf16.msra.mxu0 %v760
    %1044 = vmatpush.bf16.msra.mxu0 %v756
    %1045 = vmatpush.bf16.msra.mxu0 %v752
    %1046 = vmatpush.bf16.msra.mxu0 %v748
    %1047 = vmatpush.bf16.msra.mxu0 %v744
    %1048 = vmatpush.bf16.msra.mxu0 %v740
    %1049 = vmatpush.bf16.msra.mxu0 %v736
    %1050 = vmatpush.bf16.msra.mxu0 %v732
    %1051 = vmatmul.bf16.gmra.mxu0 %v205
    %v1052 = vpop.f32.mrf.mxu0
    %v1053 = vadd.f32 %v340, %v1052
    %v1054 = vpop.f32.mrf.mxu0
    %v1055 = vadd.f32 %v340, %v1054
    %1056 = vdwg.mxu0
    %1057 = vmatpush.bf16.msra.mxu0 %v792
    %1058 = vmatpush.bf16.msra.mxu0 %v788
    %1059 = vmatpush.bf16.msra.mxu0 %v784
    %1060 = vmatpush.bf16.msra.mxu0 %v780
    %1061 = vmatpush.bf16.msra.mxu0 %v776
    %1062 = vmatpush.bf16.msra.mxu0 %v772
    %1063 = vmatpush.bf16.msra.mxu0 %v768
    %1064 = vmatpush.bf16.msra.mxu0 %v764
    %1065 = vmatmul.bf16.gmra.mxu0 %v206
    %v1066 = vpop.f32.mrf.mxu0
    %v1067 = vadd.f32 %v1053, %v1066
    %v1068 = vpop.f32.mrf.mxu0
    %v1069 = vadd.f32 %v1055, %v1068
    %1070 = vdwg.mxu0
    %1071 = vmatpush.bf16.msra.mxu0 %v824
    %1072 = vmatpush.bf16.msra.mxu0 %v820
    %1073 = vmatpush.bf16.msra.mxu0 %v816
    %1074 = vmatpush.bf16.msra.mxu0 %v812
    %1075 = vmatpush.bf16.msra.mxu0 %v808
    %1076 = vmatpush.bf16.msra.mxu0 %v804
    %1077 = vmatpush.bf16.msra.mxu0 %v800
    %1078 = vmatpush.bf16.msra.mxu0 %v796
    %1079 = vmatmul.bf16.gmra.mxu0 %v207
    %v1080 = vpop.f32.mrf.mxu0
    %v1081 = vadd.f32 %v1067, %v1080
    %v1082 = vpop.f32.mrf.mxu0
    %v1083 = vadd.f32 %v1069, %v1082
    %1084 = vdwg.mxu0
    %1085 = vmatpush.bf16.msra.mxu0 %v856
    %1086 = vmatpush.bf16.msra.mxu0 %v852
    %1087 = vmatpush.bf16.msra.mxu0 %v848
    %1088 = vmatpush.bf16.msra.mxu0 %v844
    %1089 = vmatpush.bf16.msra.mxu0 %v840
    %1090 = vmatpush.bf16.msra.mxu0 %v836
    %1091 = vmatpush.bf16.msra.mxu0 %v832
    %1092 = vmatpush.bf16.msra.mxu0 %v828
    %1093 = vmatmul.bf16.gmra.mxu0 %v208
    %v1094 = vpop.f32.mrf.mxu0
    %v1095 = vadd.f32 %v1081, %v1094
    %v1096 = vpop.f32.mrf.mxu0
    %v1097 = vadd.f32 %v1083, %v1096
    %1098 = vdwg.mxu0
    %1099 = vmatpush.bf16.msra.mxu0 %v761
    %1100 = vmatpush.bf16.msra.mxu0 %v757
    %1101 = vmatpush.bf16.msra.mxu0 %v753
    %1102 = vmatpush.bf16.msra.mxu0 %v749
    %1103 = vmatpush.bf16.msra.mxu0 %v745
    %1104 = vmatpush.bf16.msra.mxu0 %v741
    %1105 = vmatpush.bf16.msra.mxu0 %v737
    %1106 = vmatpush.bf16.msra.mxu0 %v733
    %1107 = vmatmul.bf16.gmra.mxu0 %v205
    %v1108 = vpop.f32.mrf.mxu0
    %v1109 = vadd.f32 %v341, %v1108
    %v1110 = vpop.f32.mrf.mxu0
    %v1111 = vadd.f32 %v341, %v1110
    %1112 = vdwg.mxu0
    %1113 = vmatpush.bf16.msra.mxu0 %v793
    %1114 = vmatpush.bf16.msra.mxu0 %v789
    %1115 = vmatpush.bf16.msra.mxu0 %v785
    %1116 = vmatpush.bf16.msra.mxu0 %v781
    %1117 = vmatpush.bf16.msra.mxu0 %v777
    %1118 = vmatpush.bf16.msra.mxu0 %v773
    %1119 = vmatpush.bf16.msra.mxu0 %v769
    %1120 = vmatpush.bf16.msra.mxu0 %v765
    %1121 = vmatmul.bf16.gmra.mxu0 %v206
    %v1122 = vpop.f32.mrf.mxu0
    %v1123 = vadd.f32 %v1109, %v1122
    %v1124 = vpop.f32.mrf.mxu0
    %v1125 = vadd.f32 %v1111, %v1124
    %1126 = vdwg.mxu0
    %1127 = vmatpush.bf16.msra.mxu0 %v825
    %1128 = vmatpush.bf16.msra.mxu0 %v821
    %1129 = vmatpush.bf16.msra.mxu0 %v817
    %1130 = vmatpush.bf16.msra.mxu0 %v813
    %1131 = vmatpush.bf16.msra.mxu0 %v809
    %1132 = vmatpush.bf16.msra.mxu0 %v805
    %1133 = vmatpush.bf16.msra.mxu0 %v801
    %1134 = vmatpush.bf16.msra.mxu0 %v797
    %1135 = vmatmul.bf16.gmra.mxu0 %v207
    %v1136 = vpop.f32.mrf.mxu0
    %v1137 = vadd.f32 %v1123, %v1136
    %v1138 = vpop.f32.mrf.mxu0
    %v1139 = vadd.f32 %v1125, %v1138
    %1140 = vdwg.mxu0
    %1141 = vmatpush.bf16.msra.mxu0 %v857
    %1142 = vmatpush.bf16.msra.mxu0 %v853
    %1143 = vmatpush.bf16.msra.mxu0 %v849
    %1144 = vmatpush.bf16.msra.mxu0 %v845
    %1145 = vmatpush.bf16.msra.mxu0 %v841
    %1146 = vmatpush.bf16.msra.mxu0 %v837
    %1147 = vmatpush.bf16.msra.mxu0 %v833
    %1148 = vmatpush.bf16.msra.mxu0 %v829
    %1149 = vmatmul.bf16.gmra.mxu0 %v208
    %v1150 = vpop.f32.mrf.mxu0
    %v1151 = vadd.f32 %v1137, %v1150
    %v1152 = vpop.f32.mrf.mxu0
    %v1153 = vadd.f32 %v1139, %v1152
    %1154 = vdwg.mxu0
    %1155 = vmatpush.bf16.msra.mxu0 %v762
    %1156 = vmatpush.bf16.msra.mxu0 %v758
    %1157 = vmatpush.bf16.msra.mxu0 %v754
    %1158 = vmatpush.bf16.msra.mxu0 %v750
    %1159 = vmatpush.bf16.msra.mxu0 %v746
    %1160 = vmatpush.bf16.msra.mxu0 %v742
    %1161 = vmatpush.bf16.msra.mxu0 %v738
    %1162 = vmatpush.bf16.msra.mxu0 %v734
    %1163 = vmatmul.bf16.gmra.mxu0 %v205
    %v1164 = vpop.f32.mrf.mxu0
    %v1165 = vadd.f32 %v342, %v1164
    %v1166 = vpop.f32.mrf.mxu0
    %v1167 = vadd.f32 %v342, %v1166
    %1168 = vdwg.mxu0
    %1169 = vmatpush.bf16.msra.mxu0 %v794
    %1170 = vmatpush.bf16.msra.mxu0 %v790
    %1171 = vmatpush.bf16.msra.mxu0 %v786
    %1172 = vmatpush.bf16.msra.mxu0 %v782
    %1173 = vmatpush.bf16.msra.mxu0 %v778
    %1174 = vmatpush.bf16.msra.mxu0 %v774
    %1175 = vmatpush.bf16.msra.mxu0 %v770
    %1176 = vmatpush.bf16.msra.mxu0 %v766
    %1177 = vmatmul.bf16.gmra.mxu0 %v206
    %v1178 = vpop.f32.mrf.mxu0
    %v1179 = vadd.f32 %v1165, %v1178
    %v1180 = vpop.f32.mrf.mxu0
    %v1181 = vadd.f32 %v1167, %v1180
    %1182 = vdwg.mxu0
    %1183 = vmatpush.bf16.msra.mxu0 %v826
    %1184 = vmatpush.bf16.msra.mxu0 %v822
    %1185 = vmatpush.bf16.msra.mxu0 %v818
    %1186 = vmatpush.bf16.msra.mxu0 %v814
    %1187 = vmatpush.bf16.msra.mxu0 %v810
    %1188 = vmatpush.bf16.msra.mxu0 %v806
    %1189 = vmatpush.bf16.msra.mxu0 %v802
    %1190 = vmatpush.bf16.msra.mxu0 %v798
    %1191 = vmatmul.bf16.gmra.mxu0 %v207
    %v1192 = vpop.f32.mrf.mxu0
    %v1193 = vadd.f32 %v1179, %v1192
    %v1194 = vpop.f32.mrf.mxu0
    %v1195 = vadd.f32 %v1181, %v1194
    %1196 = vdwg.mxu0
    %1197 = vmatpush.bf16.msra.mxu0 %v858
    %1198 = vmatpush.bf16.msra.mxu0 %v854
    %1199 = vmatpush.bf16.msra.mxu0 %v850
    %1200 = vmatpush.bf16.msra.mxu0 %v846
    %1201 = vmatpush.bf16.msra.mxu0 %v842
    %1202 = vmatpush.bf16.msra.mxu0 %v838
    %1203 = vmatpush.bf16.msra.mxu0 %v834
    %1204 = vmatpush.bf16.msra.mxu0 %v830
    %1205 = vmatmul.bf16.gmra.mxu0 %v208
    %v1206 = vpop.f32.mrf.mxu0
    %v1207 = vadd.f32 %v1193, %v1206
    %v1208 = vpop.f32.mrf.mxu0
    %v1209 = vadd.f32 %v1195, %v1208
    %1210 = vdwg.mxu0
    %v1211 = vmax.f32 %v1039, 0.0
    %v1212 = vmax.f32 %v1095, 0.0
    %v1213 = vmax.f32 %v1151, 0.0
    %v1214 = vmax.f32 %v1207, 0.0
    %v1215 = vmax.f32 %v1041, 0.0
    %v1216 = vmax.f32 %v1097, 0.0
    %v1217 = vmax.f32 %v1153, 0.0
    %v1218 = vmax.f32 %v1209, 0.0
    %v1219 = vpack.c.bf16 %v1215, %v1211
    %v1220 = vpack.c.bf16 %v1216, %v1212
    %v1221 = vpack.c.bf16 %v1217, %v1213
    %v1222 = vpack.c.bf16 %v1218, %v1214
    %v1223 = vld [vmem:[#allocation6] sm:$0xff]
    %v1224 = vld [vmem:[#allocation6 + $0x8] sm:$0xff]
    %v1225 = vld [vmem:[#allocation6 + $0x10] sm:$0xff]
    %v1226 = vld [vmem:[#allocation6 + $0x18] sm:$0xff]
    %v1227 = vld [vmem:[#allocation6 + $0x20] sm:$0xff]
    %v1228 = vld [vmem:[#allocation6 + $0x28] sm:$0xff]
    %v1229 = vld [vmem:[#allocation6 + $0x30] sm:$0xff]
    %v1230 = vld [vmem:[#allocation6 + $0x38] sm:$0xff]
    %v1231 = vld [vmem:[#allocation6 + $0x40] sm:$0xff]
    %v1232 = vld [vmem:[#allocation6 + $0x48] sm:$0xff]
    %v1233 = vld [vmem:[#allocation6 + $0x50] sm:$0xff]
    %v1234 = vld [vmem:[#allocation6 + $0x58] sm:$0xff]
    %v1235 = vld [vmem:[#allocation6 + $0x60] sm:$0xff]
    %v1236 = vld [vmem:[#allocation6 + $0x68] sm:$0xff]
    %v1237 = vld [vmem:[#allocation6 + $0x70] sm:$0xff]
    %v1238 = vld [vmem:[#allocation6 + $0x78] sm:$0xff]
    %v1239 = vld [vmem:[#allocation6 + $0x80] sm:$0xff]
    %v1240 = vld [vmem:[#allocation6 + $0x88] sm:$0xff]
    %v1241 = vld [vmem:[#allocation6 + $0x90] sm:$0xff]
    %v1242 = vld [vmem:[#allocation6 + $0x98] sm:$0xff]
    %v1243 = vld [vmem:[#allocation6 + $0xa0] sm:$0xff]
    %v1244 = vld [vmem:[#allocation6 + $0xa8] sm:$0xff]
    %v1245 = vld [vmem:[#allocation6 + $0xb0] sm:$0xff]
    %v1246 = vld [vmem:[#allocation6 + $0xb8] sm:$0xff]
    %v1247 = vld [vmem:[#allocation6 + $0xc0] sm:$0xff]
    %v1248 = vld [vmem:[#allocation6 + $0xc8] sm:$0xff]
    %v1249 = vld [vmem:[#allocation6 + $0xd0] sm:$0xff]
    %v1250 = vld [vmem:[#allocation6 + $0xd8] sm:$0xff]
    %v1251 = vld [vmem:[#allocation6 + $0xe0] sm:$0xff]
    %v1252 = vld [vmem:[#allocation6 + $0xe8] sm:$0xff]
    %v1253 = vld [vmem:[#allocation6 + $0xf0] sm:$0xff]
    %v1254 = vld [vmem:[#allocation6 + $0xf8] sm:$0xff]
    %v1255 = vld [vmem:[#allocation6 + $0x100] sm:$0xff]
    %v1256 = vld [vmem:[#allocation6 + $0x108] sm:$0xff]
    %v1257 = vld [vmem:[#allocation6 + $0x110] sm:$0xff]
    %v1258 = vld [vmem:[#allocation6 + $0x118] sm:$0xff]
    %v1259 = vld [vmem:[#allocation6 + $0x120] sm:$0xff]
    %v1260 = vld [vmem:[#allocation6 + $0x128] sm:$0xff]
    %v1261 = vld [vmem:[#allocation6 + $0x130] sm:$0xff]
    %v1262 = vld [vmem:[#allocation6 + $0x138] sm:$0xff]
    %v1263 = vld [vmem:[#allocation6 + $0x140] sm:$0xff]
    %v1264 = vld [vmem:[#allocation6 + $0x148] sm:$0xff]
    %v1265 = vld [vmem:[#allocation6 + $0x150] sm:$0xff]
    %v1266 = vld [vmem:[#allocation6 + $0x158] sm:$0xff]
    %v1267 = vld [vmem:[#allocation6 + $0x160] sm:$0xff]
    %v1268 = vld [vmem:[#allocation6 + $0x168] sm:$0xff]
    %v1269 = vld [vmem:[#allocation6 + $0x170] sm:$0xff]
    %v1270 = vld [vmem:[#allocation6 + $0x178] sm:$0xff]
    %v1271 = vld [vmem:[#allocation6 + $0x180] sm:$0xff]
    %v1272 = vld [vmem:[#allocation6 + $0x188] sm:$0xff]
    %v1273 = vld [vmem:[#allocation6 + $0x190] sm:$0xff]
    %v1274 = vld [vmem:[#allocation6 + $0x198] sm:$0xff]
    %v1275 = vld [vmem:[#allocation6 + $0x1a0] sm:$0xff]
    %v1276 = vld [vmem:[#allocation6 + $0x1a8] sm:$0xff]
    %v1277 = vld [vmem:[#allocation6 + $0x1b0] sm:$0xff]
    %v1278 = vld [vmem:[#allocation6 + $0x1b8] sm:$0xff]
    %v1279 = vld [vmem:[#allocation6 + $0x1c0] sm:$0xff]
    %v1280 = vld [vmem:[#allocation6 + $0x1c8] sm:$0xff]
    %v1281 = vld [vmem:[#allocation6 + $0x1d0] sm:$0xff]
    %v1282 = vld [vmem:[#allocation6 + $0x1d8] sm:$0xff]
    %v1283 = vld [vmem:[#allocation6 + $0x1e0] sm:$0xff]
    %v1284 = vld [vmem:[#allocation6 + $0x1e8] sm:$0xff]
    %v1285 = vld [vmem:[#allocation6 + $0x1f0] sm:$0xff]
    %v1286 = vld [vmem:[#allocation6 + $0x1f8] sm:$0xff]
    %v1287 = vld [vmem:[#allocation6 + $0x200] sm:$0xff]
    %v1288 = vld [vmem:[#allocation6 + $0x208] sm:$0xff]
    %v1289 = vld [vmem:[#allocation6 + $0x210] sm:$0xff]
    %v1290 = vld [vmem:[#allocation6 + $0x218] sm:$0xff]
    %v1291 = vld [vmem:[#allocation6 + $0x220] sm:$0xff]
    %v1292 = vld [vmem:[#allocation6 + $0x228] sm:$0xff]
    %v1293 = vld [vmem:[#allocation6 + $0x230] sm:$0xff]
    %v1294 = vld [vmem:[#allocation6 + $0x238] sm:$0xff]
    %v1295 = vld [vmem:[#allocation6 + $0x240] sm:$0xff]
    %v1296 = vld [vmem:[#allocation6 + $0x248] sm:$0xff]
    %v1297 = vld [vmem:[#allocation6 + $0x250] sm:$0xff]
    %v1298 = vld [vmem:[#allocation6 + $0x258] sm:$0xff]
    %v1299 = vld [vmem:[#allocation6 + $0x260] sm:$0xff]
    %v1300 = vld [vmem:[#allocation6 + $0x268] sm:$0xff]
    %v1301 = vld [vmem:[#allocation6 + $0x270] sm:$0xff]
    %v1302 = vld [vmem:[#allocation6 + $0x278] sm:$0xff]
    %v1303 = vld [vmem:[#allocation6 + $0x280] sm:$0xff]
    %v1304 = vld [vmem:[#allocation6 + $0x288] sm:$0xff]
    %v1305 = vld [vmem:[#allocation6 + $0x290] sm:$0xff]
    %v1306 = vld [vmem:[#allocation6 + $0x298] sm:$0xff]
    %v1307 = vld [vmem:[#allocation6 + $0x2a0] sm:$0xff]
    %v1308 = vld [vmem:[#allocation6 + $0x2a8] sm:$0xff]
    %v1309 = vld [vmem:[#allocation6 + $0x2b0] sm:$0xff]
    %v1310 = vld [vmem:[#allocation6 + $0x2b8] sm:$0xff]
    %v1311 = vld [vmem:[#allocation6 + $0x2c0] sm:$0xff]
    %v1312 = vld [vmem:[#allocation6 + $0x2c8] sm:$0xff]
    %v1313 = vld [vmem:[#allocation6 + $0x2d0] sm:$0xff]
    %v1314 = vld [vmem:[#allocation6 + $0x2d8] sm:$0xff]
    %v1315 = vld [vmem:[#allocation6 + $0x2e0] sm:$0xff]
    %v1316 = vld [vmem:[#allocation6 + $0x2e8] sm:$0xff]
    %v1317 = vld [vmem:[#allocation6 + $0x2f0] sm:$0xff]
    %v1318 = vld [vmem:[#allocation6 + $0x2f8] sm:$0xff]
    %v1319 = vld [vmem:[#allocation6 + $0x300] sm:$0xff]
    %v1320 = vld [vmem:[#allocation6 + $0x308] sm:$0xff]
    %v1321 = vld [vmem:[#allocation6 + $0x310] sm:$0xff]
    %v1322 = vld [vmem:[#allocation6 + $0x318] sm:$0xff]
    %v1323 = vld [vmem:[#allocation6 + $0x320] sm:$0xff]
    %v1324 = vld [vmem:[#allocation6 + $0x328] sm:$0xff]
    %v1325 = vld [vmem:[#allocation6 + $0x330] sm:$0xff]
    %v1326 = vld [vmem:[#allocation6 + $0x338] sm:$0xff]
    %v1327 = vld [vmem:[#allocation6 + $0x340] sm:$0xff]
    %v1328 = vld [vmem:[#allocation6 + $0x348] sm:$0xff]
    %v1329 = vld [vmem:[#allocation6 + $0x350] sm:$0xff]
    %v1330 = vld [vmem:[#allocation6 + $0x358] sm:$0xff]
    %v1331 = vld [vmem:[#allocation6 + $0x360] sm:$0xff]
    %v1332 = vld [vmem:[#allocation6 + $0x368] sm:$0xff]
    %v1333 = vld [vmem:[#allocation6 + $0x370] sm:$0xff]
    %v1334 = vld [vmem:[#allocation6 + $0x378] sm:$0xff]
    %v1335 = vld [vmem:[#allocation6 + $0x380] sm:$0xff]
    %v1336 = vld [vmem:[#allocation6 + $0x388] sm:$0xff]
    %v1337 = vld [vmem:[#allocation6 + $0x390] sm:$0xff]
    %v1338 = vld [vmem:[#allocation6 + $0x398] sm:$0xff]
    %v1339 = vld [vmem:[#allocation6 + $0x3a0] sm:$0xff]
    %v1340 = vld [vmem:[#allocation6 + $0x3a8] sm:$0xff]
    %v1341 = vld [vmem:[#allocation6 + $0x3b0] sm:$0xff]
    %v1342 = vld [vmem:[#allocation6 + $0x3b8] sm:$0xff]
    %v1343 = vld [vmem:[#allocation6 + $0x3c0] sm:$0xff]
    %v1344 = vld [vmem:[#allocation6 + $0x3c8] sm:$0xff]
    %v1345 = vld [vmem:[#allocation6 + $0x3d0] sm:$0xff]
    %v1346 = vld [vmem:[#allocation6 + $0x3d8] sm:$0xff]
    %v1347 = vld [vmem:[#allocation6 + $0x3e0] sm:$0xff]
    %v1348 = vld [vmem:[#allocation6 + $0x3e8] sm:$0xff]
    %v1349 = vld [vmem:[#allocation6 + $0x3f0] sm:$0xff]
    %v1350 = vld [vmem:[#allocation6 + $0x3f8] sm:$0xff]
    %v1351 = vld [vmem:[%s6] sm:$0xf]
    %v1353 = vperm.slane %v1351, 0
    %v1354 = vperm.slane %v1351, 1
    %v1355 = vperm.slane %v1351, 2
    %v1356 = vperm.slane %v1351, 3
    %v1489 = vunpack.c.l.b16 %v1223
    %v1490 = vunpack.c.h.b16 %v1223
    %v1491 = vunpack.c.l.b16 %v1224
    %v1492 = vunpack.c.h.b16 %v1224
    %v1493 = vunpack.c.l.b16 %v1225
    %v1494 = vunpack.c.h.b16 %v1225
    %v1495 = vunpack.c.l.b16 %v1226
    %v1496 = vunpack.c.h.b16 %v1226
    %v1497 = vunpack.c.l.b16 %v1227
    %v1498 = vunpack.c.h.b16 %v1227
    %v1499 = vunpack.c.l.b16 %v1228
    %v1500 = vunpack.c.h.b16 %v1228
    %v1501 = vunpack.c.l.b16 %v1229
    %v1502 = vunpack.c.h.b16 %v1229
    %v1503 = vunpack.c.l.b16 %v1230
    %v1504 = vunpack.c.h.b16 %v1230
    %v1505 = vunpack.c.l.b16 %v1231
    %v1506 = vunpack.c.h.b16 %v1231
    %v1507 = vunpack.c.l.b16 %v1232
    %v1508 = vunpack.c.h.b16 %v1232
    %v1509 = vunpack.c.l.b16 %v1233
    %v1510 = vunpack.c.h.b16 %v1233
    %v1511 = vunpack.c.l.b16 %v1234
    %v1512 = vunpack.c.h.b16 %v1234
    %v1513 = vunpack.c.l.b16 %v1235
    %v1514 = vunpack.c.h.b16 %v1235
    %v1515 = vunpack.c.l.b16 %v1236
    %v1516 = vunpack.c.h.b16 %v1236
    %v1517 = vunpack.c.l.b16 %v1237
    %v1518 = vunpack.c.h.b16 %v1237
    %v1519 = vunpack.c.l.b16 %v1238
    %v1520 = vunpack.c.h.b16 %v1238
    %v1521 = vunpack.c.l.b16 %v1239
    %v1522 = vunpack.c.h.b16 %v1239
    %v1523 = vunpack.c.l.b16 %v1240
    %v1524 = vunpack.c.h.b16 %v1240
    %v1525 = vunpack.c.l.b16 %v1241
    %v1526 = vunpack.c.h.b16 %v1241
    %v1527 = vunpack.c.l.b16 %v1242
    %v1528 = vunpack.c.h.b16 %v1242
    %v1529 = vunpack.c.l.b16 %v1243
    %v1530 = vunpack.c.h.b16 %v1243
    %v1531 = vunpack.c.l.b16 %v1244
    %v1532 = vunpack.c.h.b16 %v1244
    %v1533 = vunpack.c.l.b16 %v1245
    %v1534 = vunpack.c.h.b16 %v1245
    %v1535 = vunpack.c.l.b16 %v1246
    %v1536 = vunpack.c.h.b16 %v1246
    %v1537 = vunpack.c.l.b16 %v1247
    %v1538 = vunpack.c.h.b16 %v1247
    %v1539 = vunpack.c.l.b16 %v1248
    %v1540 = vunpack.c.h.b16 %v1248
    %v1541 = vunpack.c.l.b16 %v1249
    %v1542 = vunpack.c.h.b16 %v1249
    %v1543 = vunpack.c.l.b16 %v1250
    %v1544 = vunpack.c.h.b16 %v1250
    %v1545 = vunpack.c.l.b16 %v1251
    %v1546 = vunpack.c.h.b16 %v1251
    %v1547 = vunpack.c.l.b16 %v1252
    %v1548 = vunpack.c.h.b16 %v1252
    %v1549 = vunpack.c.l.b16 %v1253
    %v1550 = vunpack.c.h.b16 %v1253
    %v1551 = vunpack.c.l.b16 %v1254
    %v1552 = vunpack.c.h.b16 %v1254
    %v1553 = vunpack.c.l.b16 %v1255
    %v1554 = vunpack.c.h.b16 %v1255
    %v1555 = vunpack.c.l.b16 %v1256
    %v1556 = vunpack.c.h.b16 %v1256
    %v1557 = vunpack.c.l.b16 %v1257
    %v1558 = vunpack.c.h.b16 %v1257
    %v1559 = vunpack.c.l.b16 %v1258
    %v1560 = vunpack.c.h.b16 %v1258
    %v1561 = vunpack.c.l.b16 %v1259
    %v1562 = vunpack.c.h.b16 %v1259
    %v1563 = vunpack.c.l.b16 %v1260
    %v1564 = vunpack.c.h.b16 %v1260
    %v1565 = vunpack.c.l.b16 %v1261
    %v1566 = vunpack.c.h.b16 %v1261
    %v1567 = vunpack.c.l.b16 %v1262
    %v1568 = vunpack.c.h.b16 %v1262
    %v1569 = vunpack.c.l.b16 %v1263
    %v1570 = vunpack.c.h.b16 %v1263
    %v1571 = vunpack.c.l.b16 %v1264
    %v1572 = vunpack.c.h.b16 %v1264
    %v1573 = vunpack.c.l.b16 %v1265
    %v1574 = vunpack.c.h.b16 %v1265
    %v1575 = vunpack.c.l.b16 %v1266
    %v1576 = vunpack.c.h.b16 %v1266
    %v1577 = vunpack.c.l.b16 %v1267
    %v1578 = vunpack.c.h.b16 %v1267
    %v1579 = vunpack.c.l.b16 %v1268
    %v1580 = vunpack.c.h.b16 %v1268
    %v1581 = vunpack.c.l.b16 %v1269
    %v1582 = vunpack.c.h.b16 %v1269
    %v1583 = vunpack.c.l.b16 %v1270
    %v1584 = vunpack.c.h.b16 %v1270
    %v1585 = vunpack.c.l.b16 %v1271
    %v1586 = vunpack.c.h.b16 %v1271
    %v1587 = vunpack.c.l.b16 %v1272
    %v1588 = vunpack.c.h.b16 %v1272
    %v1589 = vunpack.c.l.b16 %v1273
    %v1590 = vunpack.c.h.b16 %v1273
    %v1591 = vunpack.c.l.b16 %v1274
    %v1592 = vunpack.c.h.b16 %v1274
    %v1593 = vunpack.c.l.b16 %v1275
    %v1594 = vunpack.c.h.b16 %v1275
    %v1595 = vunpack.c.l.b16 %v1276
    %v1596 = vunpack.c.h.b16 %v1276
    %v1597 = vunpack.c.l.b16 %v1277
    %v1598 = vunpack.c.h.b16 %v1277
    %v1599 = vunpack.c.l.b16 %v1278
    %v1600 = vunpack.c.h.b16 %v1278
    %v1601 = vunpack.c.l.b16 %v1279
    %v1602 = vunpack.c.h.b16 %v1279
    %v1603 = vunpack.c.l.b16 %v1280
    %v1604 = vunpack.c.h.b16 %v1280
    %v1605 = vunpack.c.l.b16 %v1281
    %v1606 = vunpack.c.h.b16 %v1281
    %v1607 = vunpack.c.l.b16 %v1282
    %v1608 = vunpack.c.h.b16 %v1282
    %v1609 = vunpack.c.l.b16 %v1283
    %v1610 = vunpack.c.h.b16 %v1283
    %v1611 = vunpack.c.l.b16 %v1284
    %v1612 = vunpack.c.h.b16 %v1284
    %v1613 = vunpack.c.l.b16 %v1285
    %v1614 = vunpack.c.h.b16 %v1285
    %v1615 = vunpack.c.l.b16 %v1286
    %v1616 = vunpack.c.h.b16 %v1286
    %v1617 = vunpack.c.l.b16 %v1287
    %v1618 = vunpack.c.h.b16 %v1287
    %v1619 = vunpack.c.l.b16 %v1288
    %v1620 = vunpack.c.h.b16 %v1288
    %v1621 = vunpack.c.l.b16 %v1289
    %v1622 = vunpack.c.h.b16 %v1289
    %v1623 = vunpack.c.l.b16 %v1290
    %v1624 = vunpack.c.h.b16 %v1290
    %v1625 = vunpack.c.l.b16 %v1291
    %v1626 = vunpack.c.h.b16 %v1291
    %v1627 = vunpack.c.l.b16 %v1292
    %v1628 = vunpack.c.h.b16 %v1292
    %v1629 = vunpack.c.l.b16 %v1293
    %v1630 = vunpack.c.h.b16 %v1293
    %v1631 = vunpack.c.l.b16 %v1294
    %v1632 = vunpack.c.h.b16 %v1294
    %v1633 = vunpack.c.l.b16 %v1295
    %v1634 = vunpack.c.h.b16 %v1295
    %v1635 = vunpack.c.l.b16 %v1296
    %v1636 = vunpack.c.h.b16 %v1296
    %v1637 = vunpack.c.l.b16 %v1297
    %v1638 = vunpack.c.h.b16 %v1297
    %v1639 = vunpack.c.l.b16 %v1298
    %v1640 = vunpack.c.h.b16 %v1298
    %v1641 = vunpack.c.l.b16 %v1299
    %v1642 = vunpack.c.h.b16 %v1299
    %v1643 = vunpack.c.l.b16 %v1300
    %v1644 = vunpack.c.h.b16 %v1300
    %v1645 = vunpack.c.l.b16 %v1301
    %v1646 = vunpack.c.h.b16 %v1301
    %v1647 = vunpack.c.l.b16 %v1302
    %v1648 = vunpack.c.h.b16 %v1302
    %v1649 = vunpack.c.l.b16 %v1303
    %v1650 = vunpack.c.h.b16 %v1303
    %v1651 = vunpack.c.l.b16 %v1304
    %v1652 = vunpack.c.h.b16 %v1304
    %v1653 = vunpack.c.l.b16 %v1305
    %v1654 = vunpack.c.h.b16 %v1305
    %v1655 = vunpack.c.l.b16 %v1306
    %v1656 = vunpack.c.h.b16 %v1306
    %v1657 = vunpack.c.l.b16 %v1307
    %v1658 = vunpack.c.h.b16 %v1307
    %v1659 = vunpack.c.l.b16 %v1308
    %v1660 = vunpack.c.h.b16 %v1308
    %v1661 = vunpack.c.l.b16 %v1309
    %v1662 = vunpack.c.h.b16 %v1309
    %v1663 = vunpack.c.l.b16 %v1310
    %v1664 = vunpack.c.h.b16 %v1310
    %v1665 = vunpack.c.l.b16 %v1311
    %v1666 = vunpack.c.h.b16 %v1311
    %v1667 = vunpack.c.l.b16 %v1312
    %v1668 = vunpack.c.h.b16 %v1312
    %v1669 = vunpack.c.l.b16 %v1313
    %v1670 = vunpack.c.h.b16 %v1313
    %v1671 = vunpack.c.l.b16 %v1314
    %v1672 = vunpack.c.h.b16 %v1314
    %v1673 = vunpack.c.l.b16 %v1315
    %v1674 = vunpack.c.h.b16 %v1315
    %v1675 = vunpack.c.l.b16 %v1316
    %v1676 = vunpack.c.h.b16 %v1316
    %v1677 = vunpack.c.l.b16 %v1317
    %v1678 = vunpack.c.h.b16 %v1317
    %v1679 = vunpack.c.l.b16 %v1318
    %v1680 = vunpack.c.h.b16 %v1318
    %v1681 = vunpack.c.l.b16 %v1319
    %v1682 = vunpack.c.h.b16 %v1319
    %v1683 = vunpack.c.l.b16 %v1320
    %v1684 = vunpack.c.h.b16 %v1320
    %v1685 = vunpack.c.l.b16 %v1321
    %v1686 = vunpack.c.h.b16 %v1321
    %v1687 = vunpack.c.l.b16 %v1322
    %v1688 = vunpack.c.h.b16 %v1322
    %v1689 = vunpack.c.l.b16 %v1323
    %v1690 = vunpack.c.h.b16 %v1323
    %v1691 = vunpack.c.l.b16 %v1324
    %v1692 = vunpack.c.h.b16 %v1324
    %v1693 = vunpack.c.l.b16 %v1325
    %v1694 = vunpack.c.h.b16 %v1325
    %v1695 = vunpack.c.l.b16 %v1326
    %v1696 = vunpack.c.h.b16 %v1326
    %v1697 = vunpack.c.l.b16 %v1327
    %v1698 = vunpack.c.h.b16 %v1327
    %v1699 = vunpack.c.l.b16 %v1328
    %v1700 = vunpack.c.h.b16 %v1328
    %v1701 = vunpack.c.l.b16 %v1329
    %v1702 = vunpack.c.h.b16 %v1329
    %v1703 = vunpack.c.l.b16 %v1330
    %v1704 = vunpack.c.h.b16 %v1330
    %v1705 = vunpack.c.l.b16 %v1331
    %v1706 = vunpack.c.h.b16 %v1331
    %v1707 = vunpack.c.l.b16 %v1332
    %v1708 = vunpack.c.h.b16 %v1332
    %v1709 = vunpack.c.l.b16 %v1333
    %v1710 = vunpack.c.h.b16 %v1333
    %v1711 = vunpack.c.l.b16 %v1334
    %v1712 = vunpack.c.h.b16 %v1334
    %v1713 = vunpack.c.l.b16 %v1335
    %v1714 = vunpack.c.h.b16 %v1335
    %v1715 = vunpack.c.l.b16 %v1336
    %v1716 = vunpack.c.h.b16 %v1336
    %v1717 = vunpack.c.l.b16 %v1337
    %v1718 = vunpack.c.h.b16 %v1337
    %v1719 = vunpack.c.l.b16 %v1338
    %v1720 = vunpack.c.h.b16 %v1338
    %v1721 = vunpack.c.l.b16 %v1339
    %v1722 = vunpack.c.h.b16 %v1339
    %v1723 = vunpack.c.l.b16 %v1340
    %v1724 = vunpack.c.h.b16 %v1340
    %v1725 = vunpack.c.l.b16 %v1341
    %v1726 = vunpack.c.h.b16 %v1341
    %v1727 = vunpack.c.l.b16 %v1342
    %v1728 = vunpack.c.h.b16 %v1342
    %v1729 = vunpack.c.l.b16 %v1343
    %v1730 = vunpack.c.h.b16 %v1343
    %v1731 = vunpack.c.l.b16 %v1344
    %v1732 = vunpack.c.h.b16 %v1344
    %v1733 = vunpack.c.l.b16 %v1345
    %v1734 = vunpack.c.h.b16 %v1345
    %v1735 = vunpack.c.l.b16 %v1346
    %v1736 = vunpack.c.h.b16 %v1346
    %v1737 = vunpack.c.l.b16 %v1347
    %v1738 = vunpack.c.h.b16 %v1347
    %v1739 = vunpack.c.l.b16 %v1348
    %v1740 = vunpack.c.h.b16 %v1348
    %v1741 = vunpack.c.l.b16 %v1349
    %v1742 = vunpack.c.h.b16 %v1349
    %v1743 = vunpack.c.l.b16 %v1350
    %v1744 = vunpack.c.h.b16 %v1350
    %v1745 = vpack.c.b16 %v1493, %v1489
    %v1746 = vpack.c.b16 %v1494, %v1490
    %v1747 = vpack.c.b16 %v1495, %v1491
    %v1748 = vpack.c.b16 %v1496, %v1492
    %v1749 = vpack.c.b16 %v1501, %v1497
    %v1750 = vpack.c.b16 %v1502, %v1498
    %v1751 = vpack.c.b16 %v1503, %v1499
    %v1752 = vpack.c.b16 %v1504, %v1500
    %v1753 = vpack.c.b16 %v1509, %v1505
    %v1754 = vpack.c.b16 %v1510, %v1506
    %v1755 = vpack.c.b16 %v1511, %v1507
    %v1756 = vpack.c.b16 %v1512, %v1508
    %v1757 = vpack.c.b16 %v1517, %v1513
    %v1758 = vpack.c.b16 %v1518, %v1514
    %v1759 = vpack.c.b16 %v1519, %v1515
    %v1760 = vpack.c.b16 %v1520, %v1516
    %v1761 = vpack.c.b16 %v1525, %v1521
    %v1762 = vpack.c.b16 %v1526, %v1522
    %v1763 = vpack.c.b16 %v1527, %v1523
    %v1764 = vpack.c.b16 %v1528, %v1524
    %v1765 = vpack.c.b16 %v1533, %v1529
    %v1766 = vpack.c.b16 %v1534, %v1530
    %v1767 = vpack.c.b16 %v1535, %v1531
    %v1768 = vpack.c.b16 %v1536, %v1532
    %v1769 = vpack.c.b16 %v1541, %v1537
    %v1770 = vpack.c.b16 %v1542, %v1538
    %v1771 = vpack.c.b16 %v1543, %v1539
    %v1772 = vpack.c.b16 %v1544, %v1540
    %v1773 = vpack.c.b16 %v1549, %v1545
    %v1774 = vpack.c.b16 %v1550, %v1546
    %v1775 = vpack.c.b16 %v1551, %v1547
    %v1776 = vpack.c.b16 %v1552, %v1548
    %v1777 = vpack.c.b16 %v1557, %v1553
    %v1778 = vpack.c.b16 %v1558, %v1554
    %v1779 = vpack.c.b16 %v1559, %v1555
    %v1780 = vpack.c.b16 %v1560, %v1556
    %v1781 = vpack.c.b16 %v1565, %v1561
    %v1782 = vpack.c.b16 %v1566, %v1562
    %v1783 = vpack.c.b16 %v1567, %v1563
    %v1784 = vpack.c.b16 %v1568, %v1564
    %v1785 = vpack.c.b16 %v1573, %v1569
    %v1786 = vpack.c.b16 %v1574, %v1570
    %v1787 = vpack.c.b16 %v1575, %v1571
    %v1788 = vpack.c.b16 %v1576, %v1572
    %v1789 = vpack.c.b16 %v1581, %v1577
    %v1790 = vpack.c.b16 %v1582, %v1578
    %v1791 = vpack.c.b16 %v1583, %v1579
    %v1792 = vpack.c.b16 %v1584, %v1580
    %v1793 = vpack.c.b16 %v1589, %v1585
    %v1794 = vpack.c.b16 %v1590, %v1586
    %v1795 = vpack.c.b16 %v1591, %v1587
    %v1796 = vpack.c.b16 %v1592, %v1588
    %v1797 = vpack.c.b16 %v1597, %v1593
    %v1798 = vpack.c.b16 %v1598, %v1594
    %v1799 = vpack.c.b16 %v1599, %v1595
    %v1800 = vpack.c.b16 %v1600, %v1596
    %v1801 = vpack.c.b16 %v1605, %v1601
    %v1802 = vpack.c.b16 %v1606, %v1602
    %v1803 = vpack.c.b16 %v1607, %v1603
    %v1804 = vpack.c.b16 %v1608, %v1604
    %v1805 = vpack.c.b16 %v1613, %v1609
    %v1806 = vpack.c.b16 %v1614, %v1610
    %v1807 = vpack.c.b16 %v1615, %v1611
    %v1808 = vpack.c.b16 %v1616, %v1612
    %v1809 = vpack.c.b16 %v1621, %v1617
    %v1810 = vpack.c.b16 %v1622, %v1618
    %v1811 = vpack.c.b16 %v1623, %v1619
    %v1812 = vpack.c.b16 %v1624, %v1620
    %v1813 = vpack.c.b16 %v1629, %v1625
    %v1814 = vpack.c.b16 %v1630, %v1626
    %v1815 = vpack.c.b16 %v1631, %v1627
    %v1816 = vpack.c.b16 %v1632, %v1628
    %v1817 = vpack.c.b16 %v1637, %v1633
    %v1818 = vpack.c.b16 %v1638, %v1634
    %v1819 = vpack.c.b16 %v1639, %v1635
    %v1820 = vpack.c.b16 %v1640, %v1636
    %v1821 = vpack.c.b16 %v1645, %v1641
    %v1822 = vpack.c.b16 %v1646, %v1642
    %v1823 = vpack.c.b16 %v1647, %v1643
    %v1824 = vpack.c.b16 %v1648, %v1644
    %v1825 = vpack.c.b16 %v1653, %v1649
    %v1826 = vpack.c.b16 %v1654, %v1650
    %v1827 = vpack.c.b16 %v1655, %v1651
    %v1828 = vpack.c.b16 %v1656, %v1652
    %v1829 = vpack.c.b16 %v1661, %v1657
    %v1830 = vpack.c.b16 %v1662, %v1658
    %v1831 = vpack.c.b16 %v1663, %v1659
    %v1832 = vpack.c.b16 %v1664, %v1660
    %v1833 = vpack.c.b16 %v1669, %v1665
    %v1834 = vpack.c.b16 %v1670, %v1666
    %v1835 = vpack.c.b16 %v1671, %v1667
    %v1836 = vpack.c.b16 %v1672, %v1668
    %v1837 = vpack.c.b16 %v1677, %v1673
    %v1838 = vpack.c.b16 %v1678, %v1674
    %v1839 = vpack.c.b16 %v1679, %v1675
    %v1840 = vpack.c.b16 %v1680, %v1676
    %v1841 = vpack.c.b16 %v1685, %v1681
    %v1842 = vpack.c.b16 %v1686, %v1682
    %v1843 = vpack.c.b16 %v1687, %v1683
    %v1844 = vpack.c.b16 %v1688, %v1684
    %v1845 = vpack.c.b16 %v1693, %v1689
    %v1846 = vpack.c.b16 %v1694, %v1690
    %v1847 = vpack.c.b16 %v1695, %v1691
    %v1848 = vpack.c.b16 %v1696, %v1692
    %v1849 = vpack.c.b16 %v1701, %v1697
    %v1850 = vpack.c.b16 %v1702, %v1698
    %v1851 = vpack.c.b16 %v1703, %v1699
    %v1852 = vpack.c.b16 %v1704, %v1700
    %v1853 = vpack.c.b16 %v1709, %v1705
    %v1854 = vpack.c.b16 %v1710, %v1706
    %v1855 = vpack.c.b16 %v1711, %v1707
    %v1856 = vpack.c.b16 %v1712, %v1708
    %v1857 = vpack.c.b16 %v1717, %v1713
    %v1858 = vpack.c.b16 %v1718, %v1714
    %v1859 = vpack.c.b16 %v1719, %v1715
    %v1860 = vpack.c.b16 %v1720, %v1716
    %v1861 = vpack.c.b16 %v1725, %v1721
    %v1862 = vpack.c.b16 %v1726, %v1722
    %v1863 = vpack.c.b16 %v1727, %v1723
    %v1864 = vpack.c.b16 %v1728, %v1724
    %v1865 = vpack.c.b16 %v1733, %v1729
    %v1866 = vpack.c.b16 %v1734, %v1730
    %v1867 = vpack.c.b16 %v1735, %v1731
    %v1868 = vpack.c.b16 %v1736, %v1732
    %v1869 = vpack.c.b16 %v1741, %v1737
    %v1870 = vpack.c.b16 %v1742, %v1738
    %v1871 = vpack.c.b16 %v1743, %v1739
    %v1872 = vpack.c.b16 %v1744, %v1740
    %2001 = vmatpush.bf16.msra.mxu0 %v1773
    %2002 = vmatpush.bf16.msra.mxu0 %v1769
    %2003 = vmatpush.bf16.msra.mxu0 %v1765
    %2004 = vmatpush.bf16.msra.mxu0 %v1761
    %2005 = vmatpush.bf16.msra.mxu0 %v1757
    %2006 = vmatpush.bf16.msra.mxu0 %v1753
    %2007 = vmatpush.bf16.msra.mxu0 %v1749
    %2008 = vmatpush.bf16.msra.mxu0 %v1745
    %2009 = vmatmul.bf16.gmra.mxu0 %v1219
    %v2010 = vpop.f32.mrf.mxu0
    %v2011 = vadd.f32 %v1353, %v2010
    %v2012 = vpop.f32.mrf.mxu0
    %v2013 = vadd.f32 %v1353, %v2012
    %2014 = vdwg.mxu0
    %2015 = vmatpush.bf16.msra.mxu0 %v1805
    %2016 = vmatpush.bf16.msra.mxu0 %v1801
    %2017 = vmatpush.bf16.msra.mxu0 %v1797
    %2018 = vmatpush.bf16.msra.mxu0 %v1793
    %2019 = vmatpush.bf16.msra.mxu0 %v1789
    %2020 = vmatpush.bf16.msra.mxu0 %v1785
    %2021 = vmatpush.bf16.msra.mxu0 %v1781
    %2022 = vmatpush.bf16.msra.mxu0 %v1777
    %2023 = vmatmul.bf16.gmra.mxu0 %v1220
    %v2024 = vpop.f32.mrf.mxu0
    %v2025 = vadd.f32 %v2011, %v2024
    %v2026 = vpop.f32.mrf.mxu0
    %v2027 = vadd.f32 %v2013, %v2026
    %2028 = vdwg.mxu0
    %2029 = vmatpush.bf16.msra.mxu0 %v1837
    %2030 = vmatpush.bf16.msra.mxu0 %v1833
    %2031 = vmatpush.bf16.msra.mxu0 %v1829
    %2032 = vmatpush.bf16.msra.mxu0 %v1825
    %2033 = vmatpush.bf16.msra.mxu0 %v1821
    %2034 = vmatpush.bf16.msra.mxu0 %v1817
    %2035 = vmatpush.bf16.msra.mxu0 %v1813
    %2036 = vmatpush.bf16.msra.mxu0 %v1809
    %2037 = vmatmul.bf16.gmra.mxu0 %v1221
    %v2038 = vpop.f32.mrf.mxu0
    %v2039 = vadd.f32 %v2025, %v2038
    %v2040 = vpop.f32.mrf.mxu0
    %v2041 = vadd.f32 %v2027, %v2040
    %2042 = vdwg.mxu0
    %2043 = vmatpush.bf16.msra.mxu0 %v1869
    %2044 = vmatpush.bf16.msra.mxu0 %v1865
    %2045 = vmatpush.bf16.msra.mxu0 %v1861
    %2046 = vmatpush.bf16.msra.mxu0 %v1857
    %2047 = vmatpush.bf16.msra.mxu0 %v1853
    %2048 = vmatpush.bf16.msra.mxu0 %v1849
    %2049 = vmatpush.bf16.msra.mxu0 %v1845
    %2050 = vmatpush.bf16.msra.mxu0 %v1841
    %2051 = vmatmul.bf16.gmra.mxu0 %v1222
    %v2052 = vpop.f32.mrf.mxu0
    %v2053 = vadd.f32 %v2039, %v2052
    %v2054 = vpop.f32.mrf.mxu0
    %v2055 = vadd.f32 %v2041, %v2054
    %2056 = vdwg.mxu0
    %2057 = vmatpush.bf16.msra.mxu0 %v1774
    %2058 = vmatpush.bf16.msra.mxu0 %v1770
    %2059 = vmatpush.bf16.msra.mxu0 %v1766
    %2060 = vmatpush.bf16.msra.mxu0 %v1762
    %2061 = vmatpush.bf16.msra.mxu0 %v1758
    %2062 = vmatpush.bf16.msra.mxu0 %v1754
    %2063 = vmatpush.bf16.msra.mxu0 %v1750
    %2064 = vmatpush.bf16.msra.mxu0 %v1746
    %2065 = vmatmul.bf16.gmra.mxu0 %v1219
    %v2066 = vpop.f32.mrf.mxu0
    %v2067 = vadd.f32 %v1354, %v2066
    %v2068 = vpop.f32.mrf.mxu0
    %v2069 = vadd.f32 %v1354, %v2068
    %2070 = vdwg.mxu0
    %2071 = vmatpush.bf16.msra.mxu0 %v1806
    %2072 = vmatpush.bf16.msra.mxu0 %v1802
    %2073 = vmatpush.bf16.msra.mxu0 %v1798
    %2074 = vmatpush.bf16.msra.mxu0 %v1794
    %2075 = vmatpush.bf16.msra.mxu0 %v1790
    %2076 = vmatpush.bf16.msra.mxu0 %v1786
    %2077 = vmatpush.bf16.msra.mxu0 %v1782
    %2078 = vmatpush.bf16.msra.mxu0 %v1778
    %2079 = vmatmul.bf16.gmra.mxu0 %v1220
    %v2080 = vpop.f32.mrf.mxu0
    %v2081 = vadd.f32 %v2067, %v2080
    %v2082 = vpop.f32.mrf.mxu0
    %v2083 = vadd.f32 %v2069, %v2082
    %2084 = vdwg.mxu0
    %2085 = vmatpush.bf16.msra.mxu0 %v1838
    %2086 = vmatpush.bf16.msra.mxu0 %v1834
    %2087 = vmatpush.bf16.msra.mxu0 %v1830
    %2088 = vmatpush.bf16.msra.mxu0 %v1826
    %2089 = vmatpush.bf16.msra.mxu0 %v1822
    %2090 = vmatpush.bf16.msra.mxu0 %v1818
    %2091 = vmatpush.bf16.msra.mxu0 %v1814
    %2092 = vmatpush.bf16.msra.mxu0 %v1810
    %2093 = vmatmul.bf16.gmra.mxu0 %v1221
    %v2094 = vpop.f32.mrf.mxu0
    %v2095 = vadd.f32 %v2081, %v2094
    %v2096 = vpop.f32.mrf.mxu0
    %v2097 = vadd.f32 %v2083, %v2096
    %2098 = vdwg.mxu0
    %2099 = vmatpush.bf16.msra.mxu0 %v1870
    %2100 = vmatpush.bf16.msra.mxu0 %v1866
    %2101 = vmatpush.bf16.msra.mxu0 %v1862
    %2102 = vmatpush.bf16.msra.mxu0 %v1858
    %2103 = vmatpush.bf16.msra.mxu0 %v1854
    %2104 = vmatpush.bf16.msra.mxu0 %v1850
    %2105 = vmatpush.bf16.msra.mxu0 %v1846
    %2106 = vmatpush.bf16.msra.mxu0 %v1842
    %2107 = vmatmul.bf16.gmra.mxu0 %v1222
    %v2108 = vpop.f32.mrf.mxu0
    %v2109 = vadd.f32 %v2095, %v2108
    %v2110 = vpop.f32.mrf.mxu0
    %v2111 = vadd.f32 %v2097, %v2110
    %2112 = vdwg.mxu0
    %2113 = vmatpush.bf16.msra.mxu0 %v1775
    %2114 = vmatpush.bf16.msra.mxu0 %v1771
    %2115 = vmatpush.bf16.msra.mxu0 %v1767
    %2116 = vmatpush.bf16.msra.mxu0 %v1763
    %2117 = vmatpush.bf16.msra.mxu0 %v1759
    %2118 = vmatpush.bf16.msra.mxu0 %v1755
    %2119 = vmatpush.bf16.msra.mxu0 %v1751
    %2120 = vmatpush.bf16.msra.mxu0 %v1747
    %2121 = vmatmul.bf16.gmra.mxu0 %v1219
    %v2122 = vpop.f32.mrf.mxu0
    %v2123 = vadd.f32 %v1355, %v2122
    %v2124 = vpop.f32.mrf.mxu0
    %v2125 = vadd.f32 %v1355, %v2124
    %2126 = vdwg.mxu0
    %2127 = vmatpush.bf16.msra.mxu0 %v1807
    %2128 = vmatpush.bf16.msra.mxu0 %v1803
    %2129 = vmatpush.bf16.msra.mxu0 %v1799
    %2130 = vmatpush.bf16.msra.mxu0 %v1795
    %2131 = vmatpush.bf16.msra.mxu0 %v1791
    %2132 = vmatpush.bf16.msra.mxu0 %v1787
    %2133 = vmatpush.bf16.msra.mxu0 %v1783
    %2134 = vmatpush.bf16.msra.mxu0 %v1779
    %2135 = vmatmul.bf16.gmra.mxu0 %v1220
    %v2136 = vpop.f32.mrf.mxu0
    %v2137 = vadd.f32 %v2123, %v2136
    %v2138 = vpop.f32.mrf.mxu0
    %v2139 = vadd.f32 %v2125, %v2138
    %2140 = vdwg.mxu0
    %2141 = vmatpush.bf16.msra.mxu0 %v1839
    %2142 = vmatpush.bf16.msra.mxu0 %v1835
    %2143 = vmatpush.bf16.msra.mxu0 %v1831
    %2144 = vmatpush.bf16.msra.mxu0 %v1827
    %2145 = vmatpush.bf16.msra.mxu0 %v1823
    %2146 = vmatpush.bf16.msra.mxu0 %v1819
    %2147 = vmatpush.bf16.msra.mxu0 %v1815
    %2148 = vmatpush.bf16.msra.mxu0 %v1811
    %2149 = vmatmul.bf16.gmra.mxu0 %v1221
    %v2150 = vpop.f32.mrf.mxu0
    %v2151 = vadd.f32 %v2137, %v2150
    %v2152 = vpop.f32.mrf.mxu0
    %v2153 = vadd.f32 %v2139, %v2152
    %2154 = vdwg.mxu0
    %2155 = vmatpush.bf16.msra.mxu0 %v1871
    %2156 = vmatpush.bf16.msra.mxu0 %v1867
    %2157 = vmatpush.bf16.msra.mxu0 %v1863
    %2158 = vmatpush.bf16.msra.mxu0 %v1859
    %2159 = vmatpush.bf16.msra.mxu0 %v1855
    %2160 = vmatpush.bf16.msra.mxu0 %v1851
    %2161 = vmatpush.bf16.msra.mxu0 %v1847
    %2162 = vmatpush.bf16.msra.mxu0 %v1843
    %2163 = vmatmul.bf16.gmra.mxu0 %v1222
    %v2164 = vpop.f32.mrf.mxu0
    %v2165 = vadd.f32 %v2151, %v2164
    %v2166 = vpop.f32.mrf.mxu0
    %v2167 = vadd.f32 %v2153, %v2166
    %2168 = vdwg.mxu0
    %2169 = vmatpush.bf16.msra.mxu0 %v1776
    %2170 = vmatpush.bf16.msra.mxu0 %v1772
    %2171 = vmatpush.bf16.msra.mxu0 %v1768
    %2172 = vmatpush.bf16.msra.mxu0 %v1764
    %2173 = vmatpush.bf16.msra.mxu0 %v1760
    %2174 = vmatpush.bf16.msra.mxu0 %v1756
    %2175 = vmatpush.bf16.msra.mxu0 %v1752
    %2176 = vmatpush.bf16.msra.mxu0 %v1748
    %2177 = vmatmul.bf16.gmra.mxu0 %v1219
    %v2178 = vpop.f32.mrf.mxu0
    %v2179 = vadd.f32 %v1356, %v2178
    %v2180 = vpop.f32.mrf.mxu0
    %v2181 = vadd.f32 %v1356, %v2180
    %2182 = vdwg.mxu0
    %2183 = vmatpush.bf16.msra.mxu0 %v1808
    %2184 = vmatpush.bf16.msra.mxu0 %v1804
    %2185 = vmatpush.bf16.msra.mxu0 %v1800
    %2186 = vmatpush.bf16.msra.mxu0 %v1796
    %2187 = vmatpush.bf16.msra.mxu0 %v1792
    %2188 = vmatpush.bf16.msra.mxu0 %v1788
    %2189 = vmatpush.bf16.msra.mxu0 %v1784
    %2190 = vmatpush.bf16.msra.mxu0 %v1780
    %2191 = vmatmul.bf16.gmra.mxu0 %v1220
    %v2192 = vpop.f32.mrf.mxu0
    %v2193 = vadd.f32 %v2179, %v2192
    %v2194 = vpop.f32.mrf.mxu0
    %v2195 = vadd.f32 %v2181, %v2194
    %2196 = vdwg.mxu0
    %2197 = vmatpush.bf16.msra.mxu0 %v1840
    %2198 = vmatpush.bf16.msra.mxu0 %v1836
    %2199 = vmatpush.bf16.msra.mxu0 %v1832
    %2200 = vmatpush.bf16.msra.mxu0 %v1828
    %2201 = vmatpush.bf16.msra.mxu0 %v1824
    %2202 = vmatpush.bf16.msra.mxu0 %v1820
    %2203 = vmatpush.bf16.msra.mxu0 %v1816
    %2204 = vmatpush.bf16.msra.mxu0 %v1812
    %2205 = vmatmul.bf16.gmra.mxu0 %v1221
    %v2206 = vpop.f32.mrf.mxu0
    %v2207 = vadd.f32 %v2193, %v2206
    %v2208 = vpop.f32.mrf.mxu0
    %v2209 = vadd.f32 %v2195, %v2208
    %2210 = vdwg.mxu0
    %2211 = vmatpush.bf16.msra.mxu0 %v1872
    %2212 = vmatpush.bf16.msra.mxu0 %v1868
    %2213 = vmatpush.bf16.msra.mxu0 %v1864
    %2214 = vmatpush.bf16.msra.mxu0 %v1860
    %2215 = vmatpush.bf16.msra.mxu0 %v1856
    %2216 = vmatpush.bf16.msra.mxu0 %v1852
    %2217 = vmatpush.bf16.msra.mxu0 %v1848
    %2218 = vmatpush.bf16.msra.mxu0 %v1844
    %2219 = vmatmul.bf16.gmra.mxu0 %v1222
    %v2220 = vpop.f32.mrf.mxu0
    %v2221 = vadd.f32 %v2207, %v2220
    %v2222 = vpop.f32.mrf.mxu0
    %v2223 = vadd.f32 %v2209, %v2222
    %2224 = vdwg.mxu0
    %v2225 = vmax.f32 %v2053, 0.0
    %v2226 = vmax.f32 %v2109, 0.0
    %v2227 = vmax.f32 %v2165, 0.0
    %v2228 = vmax.f32 %v2221, 0.0
    %v2229 = vmax.f32 %v2055, 0.0
    %v2230 = vmax.f32 %v2111, 0.0
    %v2231 = vmax.f32 %v2167, 0.0
    %v2232 = vmax.f32 %v2223, 0.0
    %v2233 = vpack.c.bf16 %v2229, %v2225
    %v2234 = vpack.c.bf16 %v2230, %v2226
    %v2235 = vpack.c.bf16 %v2231, %v2227
    %v2236 = vpack.c.bf16 %v2232, %v2228
    %v2237 = vld [vmem:[#allocation7] sm:$0xf]
    %v2238 = vld [vmem:[#allocation7 + $0x4] sm:$0xf]
    %v2239 = vld [vmem:[#allocation7 + $0x8] sm:$0xf]
    %v2240 = vld [vmem:[#allocation7 + $0xc] sm:$0xf]
    %v2241 = vld [vmem:[#allocation7 + $0x10] sm:$0xf]
    %v2242 = vld [vmem:[#allocation7 + $0x14] sm:$0xf]
    %v2243 = vld [vmem:[#allocation7 + $0x18] sm:$0xf]
    %v2244 = vld [vmem:[#allocation7 + $0x1c] sm:$0xf]
    %v2245 = vld [vmem:[#allocation7 + $0x20] sm:$0xf]
    %v2246 = vld [vmem:[#allocation7 + $0x24] sm:$0xf]
    %v2247 = vld [vmem:[#allocation7 + $0x28] sm:$0xf]
    %v2248 = vld [vmem:[#allocation7 + $0x2c] sm:$0xf]
    %v2249 = vld [vmem:[#allocation7 + $0x30] sm:$0xf]
    %v2250 = vld [vmem:[#allocation7 + $0x34] sm:$0xf]
    %v2251 = vld [vmem:[#allocation7 + $0x38] sm:$0xf]
    %v2252 = vld [vmem:[#allocation7 + $0x3c] sm:$0xf]
    %v2253 = vld [vmem:[#allocation7 + $0x40] sm:$0xf]
    %v2254 = vld [vmem:[#allocation7 + $0x44] sm:$0xf]
    %v2255 = vld [vmem:[#allocation7 + $0x48] sm:$0xf]
    %v2256 = vld [vmem:[#allocation7 + $0x4c] sm:$0xf]
    %v2257 = vld [vmem:[#allocation7 + $0x50] sm:$0xf]
    %v2258 = vld [vmem:[#allocation7 + $0x54] sm:$0xf]
    %v2259 = vld [vmem:[#allocation7 + $0x58] sm:$0xf]
    %v2260 = vld [vmem:[#allocation7 + $0x5c] sm:$0xf]
    %v2261 = vld [vmem:[#allocation7 + $0x60] sm:$0xf]
    %v2262 = vld [vmem:[#allocation7 + $0x64] sm:$0xf]
    %v2263 = vld [vmem:[#allocation7 + $0x68] sm:$0xf]
    %v2264 = vld [vmem:[#allocation7 + $0x6c] sm:$0xf]
    %v2265 = vld [vmem:[#allocation7 + $0x70] sm:$0xf]
    %v2266 = vld [vmem:[#allocation7 + $0x74] sm:$0xf]
    %v2267 = vld [vmem:[#allocation7 + $0x78] sm:$0xf]
    %v2268 = vld [vmem:[#allocation7 + $0x7c] sm:$0xf]
    %v2269 = vld [vmem:[#allocation7 + $0x80] sm:$0xf]
    %v2270 = vld [vmem:[#allocation7 + $0x84] sm:$0xf]
    %v2271 = vld [vmem:[#allocation7 + $0x88] sm:$0xf]
    %v2272 = vld [vmem:[#allocation7 + $0x8c] sm:$0xf]
    %v2273 = vld [vmem:[#allocation7 + $0x90] sm:$0xf]
    %v2274 = vld [vmem:[#allocation7 + $0x94] sm:$0xf]
    %v2275 = vld [vmem:[#allocation7 + $0x98] sm:$0xf]
    %v2276 = vld [vmem:[#allocation7 + $0x9c] sm:$0xf]
    %v2277 = vld [vmem:[#allocation7 + $0xa0] sm:$0xf]
    %v2278 = vld [vmem:[#allocation7 + $0xa4] sm:$0xf]
    %v2279 = vld [vmem:[#allocation7 + $0xa8] sm:$0xf]
    %v2280 = vld [vmem:[#allocation7 + $0xac] sm:$0xf]
    %v2281 = vld [vmem:[#allocation7 + $0xb0] sm:$0xf]
    %v2282 = vld [vmem:[#allocation7 + $0xb4] sm:$0xf]
    %v2283 = vld [vmem:[#allocation7 + $0xb8] sm:$0xf]
    %v2284 = vld [vmem:[#allocation7 + $0xbc] sm:$0xf]
    %v2285 = vld [vmem:[#allocation7 + $0xc0] sm:$0xf]
    %v2286 = vld [vmem:[#allocation7 + $0xc4] sm:$0xf]
    %v2287 = vld [vmem:[#allocation7 + $0xc8] sm:$0xf]
    %v2288 = vld [vmem:[#allocation7 + $0xcc] sm:$0xf]
    %v2289 = vld [vmem:[#allocation7 + $0xd0] sm:$0xf]
    %v2290 = vld [vmem:[#allocation7 + $0xd4] sm:$0xf]
    %v2291 = vld [vmem:[#allocation7 + $0xd8] sm:$0xf]
    %v2292 = vld [vmem:[#allocation7 + $0xdc] sm:$0xf]
    %v2293 = vld [vmem:[#allocation7 + $0xe0] sm:$0xf]
    %v2294 = vld [vmem:[#allocation7 + $0xe4] sm:$0xf]
    %v2295 = vld [vmem:[#allocation7 + $0xe8] sm:$0xf]
    %v2296 = vld [vmem:[#allocation7 + $0xec] sm:$0xf]
    %v2297 = vld [vmem:[#allocation7 + $0xf0] sm:$0xf]
    %v2298 = vld [vmem:[#allocation7 + $0xf4] sm:$0xf]
    %v2299 = vld [vmem:[#allocation7 + $0xf8] sm:$0xf]
    %v2300 = vld [vmem:[#allocation7 + $0xfc] sm:$0xf]
    %v2301 = vld [vmem:[%s8] sm:$0x1]
    %v2303 = vperm.slane %v2301, 0
    %v2369 = vunpack.c.l.b16 %v2237
    %v2370 = vunpack.c.l.b16 %v2238
    %v2371 = vunpack.c.l.b16 %v2239
    %v2372 = vunpack.c.l.b16 %v2240
    %v2373 = vunpack.c.l.b16 %v2241
    %v2374 = vunpack.c.l.b16 %v2242
    %v2375 = vunpack.c.l.b16 %v2243
    %v2376 = vunpack.c.l.b16 %v2244
    %v2377 = vunpack.c.l.b16 %v2245
    %v2378 = vunpack.c.l.b16 %v2246
    %v2379 = vunpack.c.l.b16 %v2247
    %v2380 = vunpack.c.l.b16 %v2248
    %v2381 = vunpack.c.l.b16 %v2249
    %v2382 = vunpack.c.l.b16 %v2250
    %v2383 = vunpack.c.l.b16 %v2251
    %v2384 = vunpack.c.l.b16 %v2252
    %v2385 = vunpack.c.l.b16 %v2253
    %v2386 = vunpack.c.l.b16 %v2254
    %v2387 = vunpack.c.l.b16 %v2255
    %v2388 = vunpack.c.l.b16 %v2256
    %v2389 = vunpack.c.l.b16 %v2257
    %v2390 = vunpack.c.l.b16 %v2258
    %v2391 = vunpack.c.l.b16 %v2259
    %v2392 = vunpack.c.l.b16 %v2260
    %v2393 = vunpack.c.l.b16 %v2261
    %v2394 = vunpack.c.l.b16 %v2262
    %v2395 = vunpack.c.l.b16 %v2263
    %v2396 = vunpack.c.l.b16 %v2264
    %v2397 = vunpack.c.l.b16 %v2265
    %v2398 = vunpack.c.l.b16 %v2266
    %v2399 = vunpack.c.l.b16 %v2267
    %v2400 = vunpack.c.l.b16 %v2268
    %v2401 = vunpack.c.l.b16 %v2269
    %v2402 = vunpack.c.l.b16 %v2270
    %v2403 = vunpack.c.l.b16 %v2271
    %v2404 = vunpack.c.l.b16 %v2272
    %v2405 = vunpack.c.l.b16 %v2273
    %v2406 = vunpack.c.l.b16 %v2274
    %v2407 = vunpack.c.l.b16 %v2275
    %v2408 = vunpack.c.l.b16 %v2276
    %v2409 = vunpack.c.l.b16 %v2277
    %v2410 = vunpack.c.l.b16 %v2278
    %v2411 = vunpack.c.l.b16 %v2279
    %v2412 = vunpack.c.l.b16 %v2280
    %v2413 = vunpack.c.l.b16 %v2281
    %v2414 = vunpack.c.l.b16 %v2282
    %v2415 = vunpack.c.l.b16 %v2283
    %v2416 = vunpack.c.l.b16 %v2284
    %v2417 = vunpack.c.l.b16 %v2285
    %v2418 = vunpack.c.l.b16 %v2286
    %v2419 = vunpack.c.l.b16 %v2287
    %v2420 = vunpack.c.l.b16 %v2288
    %v2421 = vunpack.c.l.b16 %v2289
    %v2422 = vunpack.c.l.b16 %v2290
    %v2423 = vunpack.c.l.b16 %v2291
    %v2424 = vunpack.c.l.b16 %v2292
    %v2425 = vunpack.c.l.b16 %v2293
    %v2426 = vunpack.c.l.b16 %v2294
    %v2427 = vunpack.c.l.b16 %v2295
    %v2428 = vunpack.c.l.b16 %v2296
    %v2429 = vunpack.c.l.b16 %v2297
    %v2430 = vunpack.c.l.b16 %v2298
    %v2431 = vunpack.c.l.b16 %v2299
    %v2432 = vunpack.c.l.b16 %v2300
    %v2433 = vpack.c.b16 %v2370, %v2369
    %v2434 = vpack.c.b16 %v2372, %v2371
    %v2435 = vpack.c.b16 %v2374, %v2373
    %v2436 = vpack.c.b16 %v2376, %v2375
    %v2437 = vpack.c.b16 %v2378, %v2377
    %v2438 = vpack.c.b16 %v2380, %v2379
    %v2439 = vpack.c.b16 %v2382, %v2381
    %v2440 = vpack.c.b16 %v2384, %v2383
    %v2441 = vpack.c.b16 %v2386, %v2385
    %v2442 = vpack.c.b16 %v2388, %v2387
    %v2443 = vpack.c.b16 %v2390, %v2389
    %v2444 = vpack.c.b16 %v2392, %v2391
    %v2445 = vpack.c.b16 %v2394, %v2393
    %v2446 = vpack.c.b16 %v2396, %v2395
    %v2447 = vpack.c.b16 %v2398, %v2397
    %v2448 = vpack.c.b16 %v2400, %v2399
    %v2449 = vpack.c.b16 %v2402, %v2401
    %v2450 = vpack.c.b16 %v2404, %v2403
    %v2451 = vpack.c.b16 %v2406, %v2405
    %v2452 = vpack.c.b16 %v2408, %v2407
    %v2453 = vpack.c.b16 %v2410, %v2409
    %v2454 = vpack.c.b16 %v2412, %v2411
    %v2455 = vpack.c.b16 %v2414, %v2413
    %v2456 = vpack.c.b16 %v2416, %v2415
    %v2457 = vpack.c.b16 %v2418, %v2417
    %v2458 = vpack.c.b16 %v2420, %v2419
    %v2459 = vpack.c.b16 %v2422, %v2421
    %v2460 = vpack.c.b16 %v2424, %v2423
    %v2461 = vpack.c.b16 %v2426, %v2425
    %v2462 = vpack.c.b16 %v2428, %v2427
    %v2463 = vpack.c.b16 %v2430, %v2429
    %v2464 = vpack.c.b16 %v2432, %v2431
    %2497 = vmatpush.bf16.msra.mxu0 %v2440
    %2498 = vmatpush.bf16.msra.mxu0 %v2439
    %2499 = vmatpush.bf16.msra.mxu0 %v2438
    %2500 = vmatpush.bf16.msra.mxu0 %v2437
    %2501 = vmatpush.bf16.msra.mxu0 %v2436
    %2502 = vmatpush.bf16.msra.mxu0 %v2435
    %2503 = vmatpush.bf16.msra.mxu0 %v2434
    %2504 = vmatpush.bf16.msra.mxu0 %v2433
    %2505 = vmatmul.bf16.gmra.mxu0 %v2233
    %v2506 = vpop.f32.mrf.mxu0
    %v2507 = vadd.f32 %v2303, %v2506
    %v2508 = vpop.f32.mrf.mxu0
    %v2509 = vadd.f32 %v2303, %v2508
    %2510 = vdwg.mxu0
    %2511 = vmatpush.bf16.msra.mxu0 %v2448
    %2512 = vmatpush.bf16.msra.mxu0 %v2447
    %2513 = vmatpush.bf16.msra.mxu0 %v2446
    %2514 = vmatpush.bf16.msra.mxu0 %v2445
    %2515 = vmatpush.bf16.msra.mxu0 %v2444
    %2516 = vmatpush.bf16.msra.mxu0 %v2443
    %2517 = vmatpush.bf16.msra.mxu0 %v2442
    %2518 = vmatpush.bf16.msra.mxu0 %v2441
    %2519 = vmatmul.bf16.gmra.mxu0 %v2234
    %v2520 = vpop.f32.mrf.mxu0
    %v2521 = vadd.f32 %v2507, %v2520
    %v2522 = vpop.f32.mrf.mxu0
    %v2523 = vadd.f32 %v2509, %v2522
    %2524 = vdwg.mxu0
    %2525 = vmatpush.bf16.msra.mxu0 %v2456
    %2526 = vmatpush.bf16.msra.mxu0 %v2455
    %2527 = vmatpush.bf16.msra.mxu0 %v2454
    %2528 = vmatpush.bf16.msra.mxu0 %v2453
    %2529 = vmatpush.bf16.msra.mxu0 %v2452
    %2530 = vmatpush.bf16.msra.mxu0 %v2451
    %2531 = vmatpush.bf16.msra.mxu0 %v2450
    %2532 = vmatpush.bf16.msra.mxu0 %v2449
    %2533 = vmatmul.bf16.gmra.mxu0 %v2235
    %v2534 = vpop.f32.mrf.mxu0
    %v2535 = vadd.f32 %v2521, %v2534
    %v2536 = vpop.f32.mrf.mxu0
    %v2537 = vadd.f32 %v2523, %v2536
    %2538 = vdwg.mxu0
    %2539 = vmatpush.bf16.msra.mxu0 %v2464
    %2540 = vmatpush.bf16.msra.mxu0 %v2463
    %2541 = vmatpush.bf16.msra.mxu0 %v2462
    %2542 = vmatpush.bf16.msra.mxu0 %v2461
    %2543 = vmatpush.bf16.msra.mxu0 %v2460
    %2544 = vmatpush.bf16.msra.mxu0 %v2459
    %2545 = vmatpush.bf16.msra.mxu0 %v2458
    %2546 = vmatpush.bf16.msra.mxu0 %v2457
    %2547 = vmatmul.bf16.gmra.mxu0 %v2236
    %v2548 = vpop.f32.mrf.mxu0
    %v2549 = vadd.f32 %v2535, %v2548
    %v2550 = vpop.f32.mrf.mxu0
    %v2551 = vadd.f32 %v2537, %v2550
    %2552 = vdwg.mxu0
    %2553 = vst [vmem:[%s9] sm:$0xff] %v2549
    %2554 = vst [vmem:[%s9 + $0x8] sm:$0xff] %v2551
    // Predicated region
    $region54: #{dqn_forward.1} parent=1 // pred_check
      _
    $region55: #{dqn_forward.1} parent=1 // pred_check_branch
      %2556 = sbr.rel (0) target = $region57
    $region56: #{dqn_forward.1} parent=1 // pred_region
      _
    $region57: #{dqn_forward.1} parent=1 // pred_fallthru
      _
    // Predicated region
    $region58: #{dqn_forward.1} parent=1 // pred_check
      _
    $region59: #{dqn_forward.1} parent=1 // pred_check_branch
      %2558 = sbr.rel (0) target = $region61
    $region60: #{dqn_forward.1} parent=1 // pred_region
      _
    $region61: #{dqn_forward.1} parent=1 // pred_fallthru
      _
    %2559 = vsyncpa [#allocation3], 1
    %2560 = vsyncpa [#allocation5], 1
    %2561 = vsyncpa [#allocation8], 1

</llo_original>
